<compile_context>
chip_gen: v7x
topology: tpu7x:2x2x1
jax: 0.10.0
libtpu: 0.0.40
codegen_flags: <defaults>
</compile_context>

<pallas_src>
import jax
import jax.numpy as jnp
from jax.experimental import pallas as pl
from jax.experimental.pallas import tpu as pltpu

MAX_TEXT_LEN = 256      # self.max_text_len in the module
GN_GROUPS = 32          # GroupNorm(32, hidden_dim)
GN_EPS = 1e-5
INV_SIG_EPS = 1e-3      # inverse_sigmoid eps
BOX_PAD = 128           # bbox head output padded to a lane-dense 128-wide slab


# ----------------------------------------------------------------------------
# Kernel 1: input_proj[0] = 1x1 Conv2d(Cin -> hidden) + GroupNorm(32, hidden)
# Channels-first, lane axis = HW.  One grid step per batch element.
# ----------------------------------------------------------------------------
def _input_proj_kernel(x_ref, wt_ref, b_ref, gamma_ref, beta_ref, gmat_ref,
                       o_ref):
    x = x_ref[0]                                                  # (Cin, HW) bf16
    # 1x1 conv as a channels-first matmul: (Cout, Cin) @ (Cin, HW) -> (Cout, HW)
    y = (jnp.dot(wt_ref[...], x, preferred_element_type=jnp.float32)
         + b_ref[...])                                            # (Cout, HW) f32
    inv_hw = 1.0 / y.shape[1]
    # GroupNorm(32), two-pass variance (avoids E[y^2]-E[y]^2 cancellation):
    # per-channel reduction over the HW lane axis, then a block-diagonal
    # averaging matvec to combine the Cout/32 channels of each group.
    mean_c = jnp.sum(y, axis=1, keepdims=True) * inv_hw           # (Cout, 1)
    gmean = jnp.dot(gmat_ref[...], mean_c,
                    preferred_element_type=jnp.float32)           # group mean
    centered = y - gmean
    msq_c = jnp.sum(centered * centered, axis=1, keepdims=True) * inv_hw
    gvar = jnp.dot(gmat_ref[...], msq_c,
                   preferred_element_type=jnp.float32)            # group var
    yn = centered * jax.lax.rsqrt(gvar + GN_EPS)
    o_ref[0] = yn * gamma_ref[...] + beta_ref[...]


def input_proj(x_bchw, wt, b, gamma, beta, gmat):
    # x_bchw: (B, Cin, HW) bf16, wt: (Cout, Cin) bf16, b/gamma/beta: (Cout, 1) f32
    B, Cin, HW = x_bchw.shape
    Cout = wt.shape[0]
    # TODO(synk): at production shapes (HW ~ 1e4) tile the HW axis (>=512 cols
    # per block, two-pass GroupNorm across tiles) and set vmem_limit_bytes so a
    # double-buffered block fits v7x's 64 MiB VMEM.
    return pl.pallas_call(
        _input_proj_kernel,
        grid=(B,),
        in_specs=[
            pl.BlockSpec((1, Cin, HW), lambda i: (i, 0, 0)),
            pl.BlockSpec((Cout, Cin), lambda i: (0, 0)),
            pl.BlockSpec((Cout, 1), lambda i: (0, 0)),
            pl.BlockSpec((Cout, 1), lambda i: (0, 0)),
            pl.BlockSpec((Cout, 1), lambda i: (0, 0)),
            pl.BlockSpec((Cout, Cout), lambda i: (0, 0)),
        ],
        out_specs=pl.BlockSpec((1, Cout, HW), lambda i: (i, 0, 0)),
        out_shape=jax.ShapeDtypeStruct((B, Cout, HW), jnp.float32),
        compiler_params=pltpu.CompilerParams(dimension_semantics=("parallel",)),
    )(x_bchw, wt, b, gamma, beta, gmat)


# ----------------------------------------------------------------------------
# Kernel 2: fused decoder heads for the LAST layer, one grid step per batch:
#   feat_map (Linear bert_hidden->hidden) -> zero-padded text slab (VMEM)
#   ContrastiveEmbed: hs @ text^T + additive 0/-inf mask bias       (Q, 256)
#   bbox MLP(hidden, hidden, 4, 3) + inverse_sigmoid(ref) + sigmoid (Q, 128 slab)
# ----------------------------------------------------------------------------
def _fused_head_kernel(bert_ref, hs_ref, refp_ref, bias_ref,
                       wf_ref, bf_ref, w1_ref, b1_ref, w2_ref, b2_ref,
                       w3_ref, b3_ref,
                       logits_ref, box_ref, txt_scratch):
    # ---- feat_map on this batch's BERT last_hidden_state -> (L, hidden) f32
    txt = (jnp.dot(bert_ref[0], wf_ref[...], preferred_element_type=jnp.float32)
           + bf_ref[...])
    L = txt.shape[0]
    # Zero-padded (MAX_TEXT_LEN, hidden) text slab.  Re-zeroed every grid step so
    # the kernel stays correct if the batch axis is sharded across TensorCores.
    txt_scratch[...] = jnp.zeros_like(txt_scratch)
    txt_scratch[0:L, :] = txt

    hs = hs_ref[0]                                                 # (Q, hidden) bf16

    # ---- ContrastiveEmbed: hs @ text_pad^T, mask applied as additive bias ----
    logits = jax.lax.dot_general(
        hs, txt_scratch[...].astype(hs.dtype), (((1,), (1,)), ((), ())),
        preferred_element_type=jnp.float32)                        # (Q, 256)
    logits_ref[0] = logits + bias_ref[0]        # bias: 0 valid, -inf masked/pad

    # ---- bbox MLP (3 layers, ReLU) on the same resident hs tile ----
    h = jnp.maximum(
        jnp.dot(hs, w1_ref[...], preferred_element_type=jnp.float32)
        + b1_ref[...], 0.0)
    h = jnp.maximum(
        jnp.dot(h.astype(hs.dtype), w2_ref[...],
                preferred_element_type=jnp.float32) + b2_ref[...], 0.0)
    delta = (jnp.dot(h.astype(hs.dtype), w3_ref[...],
                     preferred_element_type=jnp.float32)
             + b3_ref[...])                                        # (Q, BOX_PAD)
    # inverse_sigmoid(reference) + sigmoid epilogue (f32)
    r = jnp.clip(refp_ref[0], 0.0, 1.0)
    x1 = jnp.maximum(r, INV_SIG_EPS)
    x2 = jnp.maximum(1.0 - r, INV_SIG_EPS)
    box_ref[0] = jax.nn.sigmoid(delta + jnp.log(x1 / x2))


def fused_heads(bert_hidden, hs_last, ref_pad, bias, p):
    B, L, BH = bert_hidden.shape
    _, Q, hidden = hs_last.shape
    const = lambda i: (0, 0)
    return pl.pallas_call(
        _fused_head_kernel,
        grid=(B,),
        in_specs=[
            pl.BlockSpec((1, L, BH), lambda i: (i, 0, 0)),
            pl.BlockSpec((1, Q, hidden), lambda i: (i, 0, 0)),
            pl.BlockSpec((1, Q, BOX_PAD), lambda i: (i, 0, 0)),
            pl.BlockSpec((1, 1, MAX_TEXT_LEN), lambda i: (i, 0, 0)),
            pl.BlockSpec((BH, hidden), const),
            pl.BlockSpec((1, hidden), const),
            pl.BlockSpec((hidden, hidden), const),
            pl.BlockSpec((1, hidden), const),
            pl.BlockSpec((hidden, hidden), const),
            pl.BlockSpec((1, hidden), const),
            pl.BlockSpec((hidden, BOX_PAD), const),
            pl.BlockSpec((1, BOX_PAD), const),
        ],
        out_specs=(
            pl.BlockSpec((1, Q, MAX_TEXT_LEN), lambda i: (i, 0, 0)),
            pl.BlockSpec((1, Q, BOX_PAD), lambda i: (i, 0, 0)),
        ),
        out_shape=(
            jax.ShapeDtypeStruct((B, Q, MAX_TEXT_LEN), jnp.float32),
            jax.ShapeDtypeStruct((B, Q, BOX_PAD), jnp.float32),
        ),
        scratch_shapes=[pltpu.VMEM((MAX_TEXT_LEN, hidden), jnp.float32)],
        compiler_params=pltpu.CompilerParams(dimension_semantics=("parallel",)),
    )(bert_hidden, hs_last, ref_pad, bias,
      p["feat_map_w"], p["feat_map_b"],
      p["mlp_w1"], p["mlp_b1"], p["mlp_w2"], p["mlp_b2"],
      p["mlp_w3_pad"], p["mlp_b3_pad"])


# ----------------------------------------------------------------------------
# Forward (glue in plain JAX; hot paths in the two Pallas kernels above)
# ----------------------------------------------------------------------------
def it_decoder_forward(img_nchw, bert_last_hidden, text_token_mask, params,
                       hs, reference):
    B, Cb, H, W = img_nchw.shape

    # input_proj[0]: channels-first so no NCHW<->NHWC transposes are needed.
    x_bchw = img_nchw.reshape(B, Cb, H * W).astype(jnp.bfloat16)
    src = input_proj(x_bchw, params["proj_wt"], params["proj_b"],
                     params["gn_gamma"], params["gn_beta"], params["gn_gmat"])
    _srcs0 = src.reshape(B, src.shape[1], H, W)        # already NCHW

    # TODO(synk): tokenizer, BERT language backbone, positional encoding and the
    # deformable transformer are external sub-modules with no Pallas
    # equivalent; `hs` / `reference` (transformer outputs) are stub inputs and
    # `_srcs0` / the encoded text would feed that transformer.

    # forward() only returns outputs[-1], so only the last decoder layer's
    # bbox / class heads are evaluated (aux_loss outputs are not produced).
    num_layers = hs.shape[0]
    hs_last = hs[num_layers - 1].astype(jnp.bfloat16)              # (B, Q, hidden)
    ref_last = reference[num_layers - 1]                           # == ref[:-1][-1]
    ref_pad = jnp.pad(ref_last,
                      ((0, 0), (0, 0), (0, BOX_PAD - ref_last.shape[-1])))

    # Additive contrastive mask: 0 for valid tokens, -inf for masked / padded.
    L = bert_last_hidden.shape[1]
    mask_pad = jnp.zeros((hs_last.shape[0], MAX_TEXT_LEN), jnp.bool_)
    mask_pad = mask_pad.at[:, :L].set(text_token_mask)
    bias = jnp.where(mask_pad, 0.0, -jnp.inf).astype(jnp.float32)[:, None, :]

    logits, box_pad = fused_heads(bert_last_hidden.astype(jnp.bfloat16),
                                  hs_last, ref_pad, bias, params)
    return {"pred_logits": logits, "pred_boxes": box_pad[:, :, :4]}


# ----------------------------------------------------------------------------
if __name__ == "__main__":
    key = jax.random.PRNGKey(0)
    B, Cb, H, W = 2, 4, 16, 16          # backbone_out_channels = 4
    HIDDEN = 128                        # transformer.d_model
    BERT_H = 32                         # synthetic BERT hidden size
    L = 8                               # tokenized caption length
    Q = 16                              # num_queries (stubbed transformer)
    NUM_DEC_LAYERS = 2

    ks = jax.random.split(key, 16)

    # Inputs
    img_encoding = jax.random.normal(ks[0], (B, Cb, H, W), jnp.float32)   # NCHW
    bert_last_hidden = jax.random.normal(ks[1], (B, L, BERT_H), jnp.float32)
    text_token_mask = jnp.array(
        [[True] * L, [True] * (L - 3) + [False] * 3], dtype=bool)

    # Deterministic parameters, pre-laid-out for the kernels (MXU weights bf16;
    # conv weight stored transposed (Cout, Cin); bbox last layer padded to 128).
    xav = float(jnp.sqrt(6.0 / (BERT_H + HIDDEN)))
    cpg = HIDDEN // GN_GROUPS
    params = {
        # feat_map: Linear(bert_hidden, hidden); xavier_uniform W, zero bias
        "feat_map_w": jax.random.uniform(ks[2], (BERT_H, HIDDEN), jnp.float32,
                                         -xav, xav).astype(jnp.bfloat16),
        "feat_map_b": jnp.zeros((1, HIDDEN), jnp.float32),
        # input_proj: Conv2d(Cb, HIDDEN, 1) + GroupNorm(32, HIDDEN)
        "proj_wt": (jax.random.normal(ks[3], (HIDDEN, Cb), jnp.float32) * 0.1
                    ).astype(jnp.bfloat16),
        "proj_b": jax.random.normal(ks[4], (HIDDEN, 1), jnp.float32) * 0.01,
        "gn_gamma": jnp.ones((HIDDEN, 1), jnp.float32),
        "gn_beta": jnp.zeros((HIDDEN, 1), jnp.float32),
        # block-diagonal group-averaging matrix (Cout, Cout)
        "gn_gmat": (jnp.kron(jnp.eye(GN_GROUPS), jnp.ones((cpg, cpg))) / cpg
                    ).astype(jnp.float32),
        # bbox MLP(hidden, hidden, 4, 3); last layer zero-init (per __init__),
        # padded from width 4 to BOX_PAD for lane-dense stores.
        "mlp_w1": (jax.random.normal(ks[5], (HIDDEN, HIDDEN), jnp.float32) * 0.05
                   ).astype(jnp.bfloat16),
        "mlp_b1": jnp.zeros((1, HIDDEN), jnp.float32),
        "mlp_w2": (jax.random.normal(ks[6], (HIDDEN, HIDDEN), jnp.float32) * 0.05
                   ).astype(jnp.bfloat16),
        "mlp_b2": jnp.zeros((1, HIDDEN), jnp.float32),
        "mlp_w3_pad": jnp.zeros((HIDDEN, BOX_PAD), jnp.bfloat16),
        "mlp_b3_pad": jnp.zeros((1, BOX_PAD), jnp.float32),
    }

    # Stubbed transformer outputs (hs, reference)
    hs = jax.random.normal(ks[7], (NUM_DEC_LAYERS, B, Q, HIDDEN), jnp.float32)
    reference = jax.nn.sigmoid(
        jax.random.normal(ks[8], (NUM_DEC_LAYERS + 1, B, Q, 4), jnp.float32))

    out = it_decoder_forward(img_encoding, bert_last_hidden, text_token_mask,
                             params, hs, reference)
    jax.block_until_ready(out["pred_logits"])
    jax.block_until_ready(out["pred_boxes"])

    assert out["pred_logits"].shape == (B, Q, MAX_TEXT_LEN)
    assert out["pred_boxes"].shape == (B, Q, 4)
    assert bool(jnp.all(jnp.isfinite(out["pred_boxes"])))
    # logits on always-valid token columns are finite; padded columns are -inf
    assert bool(jnp.all(jnp.isfinite(out["pred_logits"][:, :, :L - 3])))
    assert bool(jnp.all(jnp.isneginf(out["pred_logits"][:, :, L:])))
    print("KERNEL_OK")
</pallas_src>

<mosaic_0001>
module attributes {stable_mosaic.version = 11 : i64} {
  func.func @_input_proj_kernel(%arg0: i32, %arg1: memref<1x4x256xbf16, #tpu.memory_space<vmem>>, %arg2: memref<128x4xbf16, #tpu.memory_space<vmem>>, %arg3: memref<128x1xf32, #tpu.memory_space<vmem>>, %arg4: memref<128x1xf32, #tpu.memory_space<vmem>>, %arg5: memref<128x1xf32, #tpu.memory_space<vmem>>, %arg6: memref<128x128xf32, #tpu.memory_space<vmem>>, %arg7: memref<1x128x256xf32, #tpu.memory_space<vmem>>) attributes {dimension_semantics = [#tpu.dimension_semantics<parallel>], iteration_bounds = array<i64: 2>, scalar_prefetch = 0 : i64, scratch_operands = 0 : i64, tpu.core_type = #tpu.core_type<tc>, window_params = [{transform_indices = @transform_0, window_bounds = array<i64: 1, 4, 256>}, {pipeline_mode = #tpu.pipeline_mode<synchronous>, transform_indices = @transform_1, window_bounds = array<i64: 128, 4>}, {pipeline_mode = #tpu.pipeline_mode<synchronous>, transform_indices = @transform_2, window_bounds = array<i64: 128, 1>}, {pipeline_mode = #tpu.pipeline_mode<synchronous>, transform_indices = @transform_3, window_bounds = array<i64: 128, 1>}, {pipeline_mode = #tpu.pipeline_mode<synchronous>, transform_indices = @transform_4, window_bounds = array<i64: 128, 1>}, {pipeline_mode = #tpu.pipeline_mode<synchronous>, transform_indices = @transform_5, window_bounds = array<i64: 128, 128>}, {transform_indices = @transform_6, window_bounds = array<i64: 1, 128, 256>}]} {
    %c0 = arith.constant 0 : index
    %c0_0 = arith.constant 0 : index
    %c0_1 = arith.constant 0 : index
    %0 = vector.load %arg1[%c0, %c0_0, %c0_1] : memref<1x4x256xbf16, #tpu.memory_space<vmem>>, vector<1x4x256xbf16>
    %1 = vector.shape_cast %0 : vector<1x4x256xbf16> to vector<4x256xbf16>
    %c0_2 = arith.constant 0 : index
    %c0_3 = arith.constant 0 : index
    %2 = vector.load %arg2[%c0_2, %c0_3] : memref<128x4xbf16, #tpu.memory_space<vmem>>, vector<128x4xbf16>
    %cst = arith.constant dense<0.000000e+00> : vector<128x256xf32>
    %3 = tpu.matmul %2, %1, %cst {dimension_numbers = #tpu.dot_dimension_numbers<[1], [0], [0], [1], [0, 0, 1, 1], [], []>} : vector<128x4xbf16>, vector<4x256xbf16>, vector<128x256xf32> -> vector<128x256xf32>
    %c0_4 = arith.constant 0 : index
    %c0_5 = arith.constant 0 : index
    %4 = vector.load %arg3[%c0_4, %c0_5] : memref<128x1xf32, #tpu.memory_space<vmem>>, vector<128x1xf32>
    %5 = vector.broadcast %4 : vector<128x1xf32> to vector<128x256xf32>
    %6 = arith.addf %3, %5 : vector<128x256xf32>
    %cst_6 = arith.constant dense<0.000000e+00> : vector<128xf32>
    %7 = vector.multi_reduction <add>, %6, %cst_6 [1] : vector<128x256xf32> to vector<128xf32>
    %8 = vector.shape_cast %7 : vector<128xf32> to vector<128x1xf32>
    %cst_7 = arith.constant 3.906250e-03 : f32
    %9 = vector.broadcast %cst_7 : f32 to vector<128x1xf32>
    %10 = arith.mulf %8, %9 : vector<128x1xf32>
    %c0_8 = arith.constant 0 : index
    %c0_9 = arith.constant 0 : index
    %11 = vector.load %arg6[%c0_8, %c0_9] : memref<128x128xf32, #tpu.memory_space<vmem>>, vector<128x128xf32>
    %cst_10 = arith.constant dense<0.000000e+00> : vector<128x1xf32>
    %12 = tpu.matmul %11, %10, %cst_10 {dimension_numbers = #tpu.dot_dimension_numbers<[1], [0], [0], [1], [0, 0, 1, 1], [], []>} : vector<128x128xf32>, vector<128x1xf32>, vector<128x1xf32> -> vector<128x1xf32>
    %13 = vector.broadcast %12 : vector<128x1xf32> to vector<128x256xf32>
    %14 = arith.subf %6, %13 : vector<128x256xf32>
    %15 = arith.mulf %14, %14 : vector<128x256xf32>
    %cst_11 = arith.constant dense<0.000000e+00> : vector<128xf32>
    %16 = vector.multi_reduction <add>, %15, %cst_11 [1] : vector<128x256xf32> to vector<128xf32>
    %17 = vector.shape_cast %16 : vector<128xf32> to vector<128x1xf32>
    %cst_12 = arith.constant 3.906250e-03 : f32
    %18 = vector.broadcast %cst_12 : f32 to vector<128x1xf32>
    %19 = arith.mulf %17, %18 : vector<128x1xf32>
    %c0_13 = arith.constant 0 : index
    %c0_14 = arith.constant 0 : index
    %20 = vector.load %arg6[%c0_13, %c0_14] : memref<128x128xf32, #tpu.memory_space<vmem>>, vector<128x128xf32>
    %cst_15 = arith.constant dense<0.000000e+00> : vector<128x1xf32>
    %21 = tpu.matmul %20, %19, %cst_15 {dimension_numbers = #tpu.dot_dimension_numbers<[1], [0], [0], [1], [0, 0, 1, 1], [], []>} : vector<128x128xf32>, vector<128x1xf32>, vector<128x1xf32> -> vector<128x1xf32>
    %cst_16 = arith.constant 9.99999974E-6 : f32
    %22 = vector.broadcast %cst_16 : f32 to vector<128x1xf32>
    %23 = arith.addf %21, %22 : vector<128x1xf32>
    %24 = math.rsqrt %23 : vector<128x1xf32>
    %25 = vector.broadcast %24 : vector<128x1xf32> to vector<128x256xf32>
    %26 = arith.mulf %14, %25 : vector<128x256xf32>
    %c0_17 = arith.constant 0 : index
    %c0_18 = arith.constant 0 : index
    %27 = vector.load %arg4[%c0_17, %c0_18] : memref<128x1xf32, #tpu.memory_space<vmem>>, vector<128x1xf32>
    %28 = vector.broadcast %27 : vector<128x1xf32> to vector<128x256xf32>
    %29 = arith.mulf %26, %28 : vector<128x256xf32>
    %c0_19 = arith.constant 0 : index
    %c0_20 = arith.constant 0 : index
    %30 = vector.load %arg5[%c0_19, %c0_20] : memref<128x1xf32, #tpu.memory_space<vmem>>, vector<128x1xf32>
    %31 = vector.broadcast %30 : vector<128x1xf32> to vector<128x256xf32>
    %32 = arith.addf %29, %31 : vector<128x256xf32>
    %c0_21 = arith.constant 0 : index
    %c0_22 = arith.constant 0 : index
    %c0_23 = arith.constant 0 : index
    %33 = vector.load %arg7[%c0_21, %c0_22, %c0_23] : memref<1x128x256xf32, #tpu.memory_space<vmem>>, vector<1x128x256xf32>
    %34 = vector.shape_cast %33 : vector<1x128x256xf32> to vector<128x256xf32>
    %35 = vector.shape_cast %32 : vector<128x256xf32> to vector<1x128x256xf32>
    tpu.vector_store %arg7[%c0_21, %c0_22, %c0_23], %35 {strides = array<i32>} : memref<1x128x256xf32, #tpu.memory_space<vmem>>, vector<1x128x256xf32>,
    return
  }
  func.func @transform_0(%arg0: i32) -> (i32, i32, i32) {
    %c0_i32 = arith.constant 0 : i32
    %c0_i32_0 = arith.constant 0 : i32
    %c0_i32_1 = arith.constant 0 : i32
    return %arg0, %c0_i32, %c0_i32_0 : i32, i32, i32
  }
  func.func @transform_1(%arg0: i32) -> (i32, i32) {
    %c0_i32 = arith.constant 0 : i32
    %c0_i32_0 = arith.constant 0 : i32
    %c0_i32_1 = arith.constant 0 : i32
    return %c0_i32, %c0_i32_0 : i32, i32
  }
  func.func @transform_2(%arg0: i32) -> (i32, i32) {
    %c0_i32 = arith.constant 0 : i32
    %c0_i32_0 = arith.constant 0 : i32
    %c0_i32_1 = arith.constant 0 : i32
    return %c0_i32, %c0_i32_0 : i32, i32
  }
  func.func @transform_3(%arg0: i32) -> (i32, i32) {
    %c0_i32 = arith.constant 0 : i32
    %c0_i32_0 = arith.constant 0 : i32
    %c0_i32_1 = arith.constant 0 : i32
    return %c0_i32, %c0_i32_0 : i32, i32
  }
  func.func @transform_4(%arg0: i32) -> (i32, i32) {
    %c0_i32 = arith.constant 0 : i32
    %c0_i32_0 = arith.constant 0 : i32
    %c0_i32_1 = arith.constant 0 : i32
    return %c0_i32, %c0_i32_0 : i32, i32
  }
  func.func @transform_5(%arg0: i32) -> (i32, i32) {
    %c0_i32 = arith.constant 0 : i32
    %c0_i32_0 = arith.constant 0 : i32
    %c0_i32_1 = arith.constant 0 : i32
    return %c0_i32, %c0_i32_0 : i32, i32
  }
  func.func @transform_6(%arg0: i32) -> (i32, i32, i32) {
    %c0_i32 = arith.constant 0 : i32
    %c0_i32_0 = arith.constant 0 : i32
    %c0_i32_1 = arith.constant 0 : i32
    return %arg0, %c0_i32, %c0_i32_0 : i32, i32, i32
  }
}

</mosaic_0001>

<llo_original>
// kernel: tpu_custom_call.1
$region0: #{tpu_custom_call.1}
  #allocation0 [shape = 'u32[]', space=smem, size = 0x4, offset = 0x4, fixed_abs, tag = 'smem constant byte address 0x4 - core index']
  #allocation1 [shape = 'u32[144,128]{1,0:T(1,128)}', space=vmem, size = 0x12000, scoped, tag = 'internal scratch']
  %s0 = inlined_call_operand.vmem [shape: bf16[2,4,256], index: 0, kind: input, shape index: {}]
  %s1 = inlined_call_operand.vmem [shape: bf16[128,4], index: 1, kind: input, shape index: {}]
  %s2 = inlined_call_operand.vmem [shape: f32[128,1], index: 2, kind: input, shape index: {}]
  %s3 = inlined_call_operand.vmem [shape: f32[128,1], index: 3, kind: input, shape index: {}]
  %s4 = inlined_call_operand.vmem [shape: f32[128,1], index: 4, kind: input, shape index: {}]
  %s5 = inlined_call_operand.vmem [shape: f32[128,128], index: 5, kind: input, shape index: {}]
  %s6 = inlined_call_operand.hbm [shape: f32[2,128,256], index: 6, kind: output, shape index: {}]
  %s7 = sld [smem:[#allocation0]]
  $region57: #{tpu_custom_call.1} parent=0
    _
  %s9 = ssub.s32 1, %s7
  %s10 = scalar_select 0, %s9, %s7
  $region1: #{tpu_custom_call.1} parent=0
    #allocation2 [shape = 'u8[262144]{0}', space=vmem, size = 0x40000, scoped, tag = 'output window, operand 0']
    #allocation3 [shape = 's32[2]{0}', space=sflag, size = 0x8, scoped, tag = 'scoped memory for tpu_custom_call.1']
    %11 = vsyncpa [#allocation3], 0
    %s12 = scalar_lea.sflag [#allocation3], 1
    %13 = vsyncpa %s12, 0
    loop: start=0, step=1, limit=4
    $region2: #{tpu_custom_call.1} parent=1 // loop_pre_header
      _
    $region3: #{tpu_custom_call.1} parent=1 // loop_header
      %s15 = sphi 0, %s19
      %p16 = scmp.ge.s32.totalorder %s15, 4
      %s25 = sphi 0, %s27
      %s28 = sphi 0, %s25
      %s29 = sphi 0, %s28
      %s45 = sphi 0, %s29
      %s49 = sphi 0, %s49
      %s51 = sphi 0, %s49
      %s52 = sphi 0, %s51
      %s66 = sphi 0, %s52
      %s70 = sphi 0, %s70
      %s72 = sphi 0, %s70
      %s73 = sphi 0, %s72
      %s87 = sphi 0, %s73
      %s91 = sphi 0, %s91
      %s93 = sphi 0, %s91
      %s94 = sphi 0, %s93
      %s108 = sphi 0, %s94
      %s112 = sphi 0, %s112
      %s114 = sphi 0, %s112
      %s115 = sphi 0, %s114
      %s129 = sphi 0, %s115
      %s133 = sphi 0, %s133
      %s135 = sphi 0, %s133
      %s136 = sphi 0, %s135
      %s150 = sphi 0, %s136
      %s156 = sphi 0, %s158
      %s159 = sphi 0, %s156
      %s160 = sphi 0, %s159
      %s176 = sphi 0, %s160
    $region4: #{tpu_custom_call.1} parent=1 // loop_header_branch
      %18 = sbr.rel (%p16) target = $region8
    $region5: #{tpu_custom_call.1} parent=1 // loop_body
      %s20 = ssub.s32 %s15, 1
      %s21 = ssub.s32 %s15, 2
      %s22 = sadd.s32 %s15, 1
      %s23 = ssub.s32 %s15, %s22
      %p24 = scmp.eq.s32.totalorder %s23, 0
      %s26 = sadd.s32 %s25, 1
      %s27 = scalar_select %p24, %s25, %s26
      %p30 = pneg %p24
      %p31 = scmp.eq.s32.totalorder %s15, 1
      %p32 = por %p30, %p31
      %p33 = scmp.ne.s32.totalorder %s25, %s28
      %p34 = scmp.eq.s32.totalorder %s15, 0
      %p35 = por %p33, %p34
      %p36 = scmp.ne.s32.totalorder %s25, %s28
      %p37 = scmp.eq.s32.totalorder %s20, 1
      %p38 = por %p36, %p37
      %p39 = scmp.ne.s32.totalorder %s28, %s29
      %p40 = scmp.eq.s32.totalorder %s20, 0
      %p41 = por %p39, %p40
      %p42 = scmp.ne.s32.totalorder %s28, %s29
      %p43 = scmp.eq.s32.totalorder %s21, 1
      %p44 = por %p42, %p43
      %p46 = scmp.ne.s32.totalorder %s29, %s45
      %p47 = scmp.eq.s32.totalorder %s21, 0
      %p48 = por %p46, %p47
      %s50 = sadd.s32 %s49, 1
      %p53 = scmp.eq.s32.totalorder %s15, 1
      %p54 = scmp.ne.s32.totalorder %s49, %s51
      %p55 = scmp.eq.s32.totalorder %s15, 0
      %p56 = por %p54, %p55
      %p57 = scmp.ne.s32.totalorder %s49, %s51
      %p58 = scmp.eq.s32.totalorder %s20, 1
      %p59 = por %p57, %p58
      %p60 = scmp.ne.s32.totalorder %s51, %s52
      %p61 = scmp.eq.s32.totalorder %s20, 0
      %p62 = por %p60, %p61
      %p63 = scmp.ne.s32.totalorder %s51, %s52
      %p64 = scmp.eq.s32.totalorder %s21, 1
      %p65 = por %p63, %p64
      %p67 = scmp.ne.s32.totalorder %s52, %s66
      %p68 = scmp.eq.s32.totalorder %s21, 0
      %p69 = por %p67, %p68
      %s71 = sadd.s32 %s70, 1
      %p74 = scmp.eq.s32.totalorder %s15, 1
      %p75 = scmp.ne.s32.totalorder %s70, %s72
      %p76 = scmp.eq.s32.totalorder %s15, 0
      %p77 = por %p75, %p76
      %p78 = scmp.ne.s32.totalorder %s70, %s72
      %p79 = scmp.eq.s32.totalorder %s20, 1
      %p80 = por %p78, %p79
      %p81 = scmp.ne.s32.totalorder %s72, %s73
      %p82 = scmp.eq.s32.totalorder %s20, 0
      %p83 = por %p81, %p82
      %p84 = scmp.ne.s32.totalorder %s72, %s73
      %p85 = scmp.eq.s32.totalorder %s21, 1
      %p86 = por %p84, %p85
      %p88 = scmp.ne.s32.totalorder %s73, %s87
      %p89 = scmp.eq.s32.totalorder %s21, 0
      %p90 = por %p88, %p89
      %s92 = sadd.s32 %s91, 1
      %p95 = scmp.eq.s32.totalorder %s15, 1
      %p96 = scmp.ne.s32.totalorder %s91, %s93
      %p97 = scmp.eq.s32.totalorder %s15, 0
      %p98 = por %p96, %p97
      %p99 = scmp.ne.s32.totalorder %s91, %s93
      %p100 = scmp.eq.s32.totalorder %s20, 1
      %p101 = por %p99, %p100
      %p102 = scmp.ne.s32.totalorder %s93, %s94
      %p103 = scmp.eq.s32.totalorder %s20, 0
      %p104 = por %p102, %p103
      %p105 = scmp.ne.s32.totalorder %s93, %s94
      %p106 = scmp.eq.s32.totalorder %s21, 1
      %p107 = por %p105, %p106
      %p109 = scmp.ne.s32.totalorder %s94, %s108
      %p110 = scmp.eq.s32.totalorder %s21, 0
      %p111 = por %p109, %p110
      %s113 = sadd.s32 %s112, 1
      %p116 = scmp.eq.s32.totalorder %s15, 1
      %p117 = scmp.ne.s32.totalorder %s112, %s114
      %p118 = scmp.eq.s32.totalorder %s15, 0
      %p119 = por %p117, %p118
      %p120 = scmp.ne.s32.totalorder %s112, %s114
      %p121 = scmp.eq.s32.totalorder %s20, 1
      %p122 = por %p120, %p121
      %p123 = scmp.ne.s32.totalorder %s114, %s115
      %p124 = scmp.eq.s32.totalorder %s20, 0
      %p125 = por %p123, %p124
      %p126 = scmp.ne.s32.totalorder %s114, %s115
      %p127 = scmp.eq.s32.totalorder %s21, 1
      %p128 = por %p126, %p127
      %p130 = scmp.ne.s32.totalorder %s115, %s129
      %p131 = scmp.eq.s32.totalorder %s21, 0
      %p132 = por %p130, %p131
      %s134 = sadd.s32 %s133, 1
      %p137 = scmp.eq.s32.totalorder %s15, 1
      %p138 = scmp.ne.s32.totalorder %s133, %s135
      %p139 = scmp.eq.s32.totalorder %s15, 0
      %p140 = por %p138, %p139
      %p141 = scmp.ne.s32.totalorder %s133, %s135
      %p142 = scmp.eq.s32.totalorder %s20, 1
      %p143 = por %p141, %p142
      %p144 = scmp.ne.s32.totalorder %s135, %s136
      %p145 = scmp.eq.s32.totalorder %s20, 0
      %p146 = por %p144, %p145
      %p147 = scmp.ne.s32.totalorder %s135, %s136
      %p148 = scmp.eq.s32.totalorder %s21, 1
      %p149 = por %p147, %p148
      %p151 = scmp.ne.s32.totalorder %s136, %s150
      %p152 = scmp.eq.s32.totalorder %s21, 0
      %p153 = por %p151, %p152
      %s154 = ssub.s32 %s15, %s22
      %p155 = scmp.eq.s32.totalorder %s154, 0
      %s157 = sadd.s32 %s156, 1
      %s158 = scalar_select %p155, %s156, %s157
      %p161 = pneg %p155
      %p162 = scmp.eq.s32.totalorder %s15, 1
      %p163 = por %p161, %p162
      %p164 = scmp.ne.s32.totalorder %s156, %s159
      %p165 = scmp.eq.s32.totalorder %s15, 0
      %p166 = por %p164, %p165
      %p167 = scmp.ne.s32.totalorder %s156, %s159
      %p168 = scmp.eq.s32.totalorder %s20, 1
      %p169 = por %p167, %p168
      %p170 = scmp.ne.s32.totalorder %s159, %s160
      %p171 = scmp.eq.s32.totalorder %s20, 0
      %p172 = por %p170, %p171
      %p173 = scmp.ne.s32.totalorder %s159, %s160
      %p174 = scmp.eq.s32.totalorder %s21, 1
      %p175 = por %p173, %p174
      %p177 = scmp.ne.s32.totalorder %s160, %s176
      %p178 = scmp.eq.s32.totalorder %s21, 0
      %p179 = por %p177, %p178
      %p180 = scmp.le.s32.totalorder 1, %s15
      %p181 = scmp.lt.s32.totalorder %s15, 3
      %p182 = pnand %p180, %p181
      %p183 = pneg %p182
      // Predicated region
      $region9: #{tpu_custom_call.1} parent=5 // pred_check
        _
      $region10: #{tpu_custom_call.1} parent=5 // pred_check_branch
        %185 = sbr.rel (%p182) target = $region12
      $region11: #{tpu_custom_call.1} parent=5 // pred_region
        %s186 = ssub.s32 %s15, 1
        // Predicated region
        $region13: #{tpu_custom_call.1} parent=11 // pred_check
          %p187 = pneg %p62
        $region14: #{tpu_custom_call.1} parent=11 // pred_check_branch
          %189 = sbr.rel (%p187) target = $region16
        $region15: #{tpu_custom_call.1} parent=11 // pred_region
          _
        $region16: #{tpu_custom_call.1} parent=11 // pred_fallthru
          _
        // Predicated region
        $region17: #{tpu_custom_call.1} parent=11 // pred_check
          %p190 = pneg %p83
        $region18: #{tpu_custom_call.1} parent=11 // pred_check_branch
          %192 = sbr.rel (%p190) target = $region20
        $region19: #{tpu_custom_call.1} parent=11 // pred_region
          _
        $region20: #{tpu_custom_call.1} parent=11 // pred_fallthru
          _
        // Predicated region
        $region21: #{tpu_custom_call.1} parent=11 // pred_check
          %p193 = pneg %p104
        $region22: #{tpu_custom_call.1} parent=11 // pred_check_branch
          %195 = sbr.rel (%p193) target = $region24
        $region23: #{tpu_custom_call.1} parent=11 // pred_region
          _
        $region24: #{tpu_custom_call.1} parent=11 // pred_fallthru
          _
        // Predicated region
        $region25: #{tpu_custom_call.1} parent=11 // pred_check
          %p196 = pneg %p125
        $region26: #{tpu_custom_call.1} parent=11 // pred_check_branch
          %198 = sbr.rel (%p196) target = $region28
        $region27: #{tpu_custom_call.1} parent=11 // pred_region
          _
        $region28: #{tpu_custom_call.1} parent=11 // pred_fallthru
          _
        // Predicated region
        $region29: #{tpu_custom_call.1} parent=11 // pred_check
          %p199 = pneg %p146
        $region30: #{tpu_custom_call.1} parent=11 // pred_check_branch
          %201 = sbr.rel (%p199) target = $region32
        $region31: #{tpu_custom_call.1} parent=11 // pred_region
          _
        $region32: #{tpu_custom_call.1} parent=11 // pred_fallthru
          _
      $region12: #{tpu_custom_call.1} parent=5 // pred_fallthru
        _
      %p202 = scmp.lt.s32.totalorder %s15, 2
      // Predicated region
      $region33: #{tpu_custom_call.1} parent=5 // pred_check
        %p203 = pneg %p202
      $region34: #{tpu_custom_call.1} parent=5 // pred_check_branch
        %205 = sbr.rel (%p203) target = $region36
      $region35: #{tpu_custom_call.1} parent=5 // pred_region
        // Predicated region
        $region37: #{tpu_custom_call.1} parent=35 // pred_check
          %p206 = pneg %p35
        $region38: #{tpu_custom_call.1} parent=35 // pred_check_branch
          %208 = sbr.rel (%p206) target = $region40
        $region39: #{tpu_custom_call.1} parent=35 // pred_region
          %p209 = scmp.lt.s32.totalorder %s15, 1
          %s210 = scalar_select %p209, %s15, 1
          %s211 = smul.addr %s210, 2
          %s212 = smul.addr %s211, 2
          %s213 = scalar_lea.vmem %s0, %s212
        $region40: #{tpu_custom_call.1} parent=35 // pred_fallthru
          _
      $region36: #{tpu_custom_call.1} parent=5 // pred_fallthru
        _
      %p214 = scmp.le.s32.totalorder 1, %s15
      %p215 = scmp.lt.s32.totalorder %s15, 3
      %p216 = pnand %p214, %p215
      %p217 = pneg %p216
      // Predicated region
      $region41: #{tpu_custom_call.1} parent=5 // pred_check
        _
      $region42: #{tpu_custom_call.1} parent=5 // pred_check_branch
        %219 = sbr.rel (%p216) target = $region44
      $region43: #{tpu_custom_call.1} parent=5 // pred_region
        %s220 = ssub.s32 %s15, 1
        %p221 = scmp.lt.s32.totalorder %s20, 1
        %s222 = scalar_select %p221, %s20, 1
        %s223 = smul.addr %s222, 2
        %s224 = smul.addr %s223, 2
        %s225 = scalar_lea.vmem %s0, %s224
        %p226 = pneg %p41
        %p227 = pneg %p38
        %p228 = pneg %p62
        %p229 = pneg %p59
        %p230 = pneg %p83
        %p231 = pneg %p80
        %p232 = pneg %p104
        %p233 = pneg %p101
        %p234 = pneg %p125
        %p235 = pneg %p122
        %p236 = pneg %p146
        %p237 = pneg %p143
        %p238 = pneg %p172
        %p239 = pneg %p169
        %s240 = sand.u32 %s159, 1
        %s241 = scalar_lea.sflag [#allocation3], %s240
        %s242 = sand.u32 %s159, 1
        %s243 = smul.addr %s242, 256
        %s244 = scalar_lea.vmem [#allocation2], %s243
        %p245 = scmp.lt.s32.totalorder %s20, 1
        %s246 = scalar_select %p245, %s20, 1
        %s247 = smul.addr %s246, 2
        %s248 = smul.addr %s247, 2
        %s249 = scalar_lea.vmem %s0, %s248
        %v251 = vld [vmem:[%s249] sm:$0xf]
        %v252 = vld [vmem:[%s1] sm:$0xf]
        %v253 = vld [vmem:[%s1 + $0x4] sm:$0xf]
        %v254 = vld [vmem:[%s1 + $0x8] sm:$0xf]
        %v255 = vld [vmem:[%s1 + $0xc] sm:$0xf]
        %v256 = vld [vmem:[%s1 + $0x10] sm:$0xf]
        %v257 = vld [vmem:[%s1 + $0x14] sm:$0xf]
        %v258 = vld [vmem:[%s1 + $0x18] sm:$0xf]
        %v259 = vld [vmem:[%s1 + $0x1c] sm:$0xf]
        %v260 = vld [vmem:[%s1 + $0x20] sm:$0xf]
        %v261 = vld [vmem:[%s1 + $0x24] sm:$0xf]
        %v262 = vld [vmem:[%s1 + $0x28] sm:$0xf]
        %v263 = vld [vmem:[%s1 + $0x2c] sm:$0xf]
        %v264 = vld [vmem:[%s1 + $0x30] sm:$0xf]
        %v265 = vld [vmem:[%s1 + $0x34] sm:$0xf]
        %v266 = vld [vmem:[%s1 + $0x38] sm:$0xf]
        %v267 = vld [vmem:[%s1 + $0x3c] sm:$0xf]
        %v268 = vld [vmem:[%s2] sm:$0xff]
        %v269 = vld [vmem:[%s2 + $0x8] sm:$0xff]
        %v270 = vld [vmem:[%s2 + $0x10] sm:$0xff]
        %v271 = vld [vmem:[%s2 + $0x18] sm:$0xff]
        %v272 = vld [vmem:[%s2 + $0x20] sm:$0xff]
        %v273 = vld [vmem:[%s2 + $0x28] sm:$0xff]
        %v274 = vld [vmem:[%s2 + $0x30] sm:$0xff]
        %v275 = vld [vmem:[%s2 + $0x38] sm:$0xff]
        %v276 = vld [vmem:[%s2 + $0x40] sm:$0xff]
        %v277 = vld [vmem:[%s2 + $0x48] sm:$0xff]
        %v278 = vld [vmem:[%s2 + $0x50] sm:$0xff]
        %v279 = vld [vmem:[%s2 + $0x58] sm:$0xff]
        %v280 = vld [vmem:[%s2 + $0x60] sm:$0xff]
        %v281 = vld [vmem:[%s2 + $0x68] sm:$0xff]
        %v282 = vld [vmem:[%s2 + $0x70] sm:$0xff]
        %v283 = vld [vmem:[%s2 + $0x78] sm:$0xff]
        %285 = vset.pattern.permute.xlu0 0
        %286 = vperm.xlu0 %285, %v268
        %v287 = vpop.permute.xlu0 %286
        %290 = vset.pattern.permute.xlu0 0
        %291 = vperm.xlu0 %290, %v269
        %v292 = vpop.permute.xlu0 %291
        %295 = vset.pattern.permute.xlu0 0
        %296 = vperm.xlu0 %295, %v270
        %v297 = vpop.permute.xlu0 %296
        %300 = vset.pattern.permute.xlu0 0
        %301 = vperm.xlu0 %300, %v271
        %v302 = vpop.permute.xlu0 %301
        %305 = vset.pattern.permute.xlu0 0
        %306 = vperm.xlu0 %305, %v272
        %v307 = vpop.permute.xlu0 %306
        %310 = vset.pattern.permute.xlu0 0
        %311 = vperm.xlu0 %310, %v273
        %v312 = vpop.permute.xlu0 %311
        %315 = vset.pattern.permute.xlu0 0
        %316 = vperm.xlu0 %315, %v274
        %v317 = vpop.permute.xlu0 %316
        %320 = vset.pattern.permute.xlu0 0
        %321 = vperm.xlu0 %320, %v275
        %v322 = vpop.permute.xlu0 %321
        %325 = vset.pattern.permute.xlu0 0
        %326 = vperm.xlu0 %325, %v276
        %v327 = vpop.permute.xlu0 %326
        %330 = vset.pattern.permute.xlu0 0
        %331 = vperm.xlu0 %330, %v277
        %v332 = vpop.permute.xlu0 %331
        %335 = vset.pattern.permute.xlu0 0
        %336 = vperm.xlu0 %335, %v278
        %v337 = vpop.permute.xlu0 %336
        %340 = vset.pattern.permute.xlu0 0
        %341 = vperm.xlu0 %340, %v279
        %v342 = vpop.permute.xlu0 %341
        %345 = vset.pattern.permute.xlu0 0
        %346 = vperm.xlu0 %345, %v280
        %v347 = vpop.permute.xlu0 %346
        %350 = vset.pattern.permute.xlu0 0
        %351 = vperm.xlu0 %350, %v281
        %v352 = vpop.permute.xlu0 %351
        %355 = vset.pattern.permute.xlu0 0
        %356 = vperm.xlu0 %355, %v282
        %v357 = vpop.permute.xlu0 %356
        %360 = vset.pattern.permute.xlu0 0
        %361 = vperm.xlu0 %360, %v283
        %v362 = vpop.permute.xlu0 %361
        %v380 = vunpack.c.l.b16 %v252
        %v381 = vunpack.c.l.b16 %v253
        %v382 = vunpack.c.l.b16 %v254
        %v383 = vunpack.c.l.b16 %v255
        %v384 = vunpack.c.l.b16 %v256
        %v385 = vunpack.c.l.b16 %v257
        %v386 = vunpack.c.l.b16 %v258
        %v387 = vunpack.c.l.b16 %v259
        %v388 = vunpack.c.l.b16 %v260
        %v389 = vunpack.c.l.b16 %v261
        %v390 = vunpack.c.l.b16 %v262
        %v391 = vunpack.c.l.b16 %v263
        %v392 = vunpack.c.l.b16 %v264
        %v393 = vunpack.c.l.b16 %v265
        %v394 = vunpack.c.l.b16 %v266
        %v395 = vunpack.c.l.b16 %v267
        %v396 = vpack.c.b16 %v381, %v380
        %v397 = vpack.c.b16 %v383, %v382
        %v398 = vpack.c.b16 %v385, %v384
        %v399 = vpack.c.b16 %v387, %v386
        %v400 = vpack.c.b16 %v389, %v388
        %v401 = vpack.c.b16 %v391, %v390
        %v402 = vpack.c.b16 %v393, %v392
        %v403 = vpack.c.b16 %v395, %v394
        %v406 = vunpack.c.l.s4 1983009808
        %v407 = vunpack.c.0.s8 %v406
        %v408 = vlaneseq
        %v409 = vshrl.u32 %v408, 7
        %v410 = vsub.s32 %v407, %v409
        %v411 = vrot.slane %v251, %v410
        %v412 = vcombine.high %v411, %v411
        %vm413 = vcmask 31744
        %v415 = vsel %vm413, %v396, 0
        %v418 = vsel %vm413, %v397, 0
        %v421 = vsel %vm413, %v398, 0
        %v424 = vsel %vm413, %v399, 0
        %v427 = vsel %vm413, %v400, 0
        %v430 = vsel %vm413, %v401, 0
        %v433 = vsel %vm413, %v402, 0
        %v436 = vsel %vm413, %v403, 0
        %vm438 = vcmask 1041408
        %v440 = vsel %vm438, %v411, 0
        %v443 = vsel %vm438, %v412, 0
        %445 = vmatprep.subr.bf16.mxu0 %v443
        %446 = vmatpush1.bf16.msra.mxu0 %v440
        %447 = vmatprep.subr.bf16.mxu0 0
        %448 = vmatpush1.bf16.msra.mxu0 0
        %449 = vmatprep.subr.bf16.mxu0 0
        %450 = vmatpush1.bf16.msra.mxu0 0
        %451 = vmatprep.subr.bf16.mxu0 0
        %452 = vmatpush1.bf16.msra.mxu0 0
        %453 = vmatprep.subr.bf16.mxu0 0
        %454 = vmatpush1.bf16.msra.mxu0 0
        %455 = vmatprep.subr.bf16.mxu0 0
        %456 = vmatpush1.bf16.msra.mxu0 0
        %457 = vmatprep.subr.bf16.mxu0 0
        %458 = vmatpush1.bf16.msra.mxu0 0
        %459 = vmatprep.subr.bf16.mxu0 0
        %460 = vmatpush1.bf16.msra.mxu0 0
        %461 = vmatprep.subr.bf16.mxu0 0
        %462 = vmatpush1.bf16.msra.mxu0 0
        %463 = vmatprep.subr.bf16.mxu0 0
        %464 = vmatpush1.bf16.msra.mxu0 0
        %465 = vmatprep.subr.bf16.mxu0 0
        %466 = vmatpush1.bf16.msra.mxu0 0
        %467 = vmatprep.subr.bf16.mxu0 0
        %468 = vmatpush1.bf16.msra.mxu0 0
        %469 = vmatprep.subr.bf16.mxu0 0
        %470 = vmatpush1.bf16.msra.mxu0 0
        %471 = vmatprep.subr.bf16.mxu0 0
        %472 = vmatpush1.bf16.msra.mxu0 0
        %473 = vmatprep.subr.bf16.mxu0 0
        %474 = vmatpush1.bf16.msra.mxu0 0
        %475 = vmatprep.subr.bf16.mxu0 0
        %476 = vmatpush1.bf16.msra.mxu0 0
        %477 = vmatprep.mubr.bf16.mxu0 0
        %478 = vmatmul.mubr.bf16.gmra.mrb[0].mxu0 %v415
        %v479 = vpop.f32.mrb[0].mxu0
        %v480 = vadd.f32 %v287, %v479
        %v481 = vpop.f32.mrb[0].mxu0
        %v482 = vadd.f32 %v287, %v481
        %v483 = vpop.f32.mrb[0].mxu0
        %v484 = vadd.f32 %v292, %v483
        %v485 = vpop.f32.mrb[0].mxu0
        %v486 = vadd.f32 %v292, %v485
        %487 = vmatprep.mubr.bf16.mxu0 0
        %488 = vmatmul.mubr.bf16.gmra.mrb[0].mxu0 %v418
        %v489 = vpop.f32.mrb[0].mxu0
        %v490 = vadd.f32 %v297, %v489
        %v491 = vpop.f32.mrb[0].mxu0
        %v492 = vadd.f32 %v297, %v491
        %v493 = vpop.f32.mrb[0].mxu0
        %v494 = vadd.f32 %v302, %v493
        %v495 = vpop.f32.mrb[0].mxu0
        %v496 = vadd.f32 %v302, %v495
        %497 = vmatprep.mubr.bf16.mxu0 0
        %498 = vmatmul.mubr.bf16.gmra.mrb[0].mxu0 %v421
        %v499 = vpop.f32.mrb[0].mxu0
        %v500 = vadd.f32 %v307, %v499
        %v501 = vpop.f32.mrb[0].mxu0
        %v502 = vadd.f32 %v307, %v501
        %v503 = vpop.f32.mrb[0].mxu0
        %v504 = vadd.f32 %v312, %v503
        %v505 = vpop.f32.mrb[0].mxu0
        %v506 = vadd.f32 %v312, %v505
        %507 = vmatprep.mubr.bf16.mxu0 0
        %508 = vmatmul.mubr.bf16.gmra.mrb[0].mxu0 %v424
        %v509 = vpop.f32.mrb[0].mxu0
        %v510 = vadd.f32 %v317, %v509
        %v511 = vpop.f32.mrb[0].mxu0
        %v512 = vadd.f32 %v317, %v511
        %v513 = vpop.f32.mrb[0].mxu0
        %v514 = vadd.f32 %v322, %v513
        %v515 = vpop.f32.mrb[0].mxu0
        %v516 = vadd.f32 %v322, %v515
        %517 = vmatprep.mubr.bf16.mxu0 0
        %518 = vmatmul.mubr.bf16.gmra.mrb[0].mxu0 %v427
        %v519 = vpop.f32.mrb[0].mxu0
        %v520 = vadd.f32 %v327, %v519
        %v521 = vpop.f32.mrb[0].mxu0
        %v522 = vadd.f32 %v327, %v521
        %v523 = vpop.f32.mrb[0].mxu0
        %v524 = vadd.f32 %v332, %v523
        %v525 = vpop.f32.mrb[0].mxu0
        %v526 = vadd.f32 %v332, %v525
        %527 = vmatprep.mubr.bf16.mxu0 0
        %528 = vmatmul.mubr.bf16.gmra.mrb[0].mxu0 %v430
        %v529 = vpop.f32.mrb[0].mxu0
        %v530 = vadd.f32 %v337, %v529
        %v531 = vpop.f32.mrb[0].mxu0
        %v532 = vadd.f32 %v337, %v531
        %v533 = vpop.f32.mrb[0].mxu0
        %v534 = vadd.f32 %v342, %v533
        %v535 = vpop.f32.mrb[0].mxu0
        %v536 = vadd.f32 %v342, %v535
        %537 = vmatprep.mubr.bf16.mxu0 0
        %538 = vmatmul.mubr.bf16.gmra.mrb[0].mxu0 %v433
        %v539 = vpop.f32.mrb[0].mxu0
        %v540 = vadd.f32 %v347, %v539
        %v541 = vpop.f32.mrb[0].mxu0
        %v542 = vadd.f32 %v347, %v541
        %v543 = vpop.f32.mrb[0].mxu0
        %v544 = vadd.f32 %v352, %v543
        %v545 = vpop.f32.mrb[0].mxu0
        %v546 = vadd.f32 %v352, %v545
        %547 = vmatprep.mubr.bf16.mxu0 0
        %548 = vmatmul.mubr.bf16.gmra.mrb[0].mxu0 %v436
        %v549 = vpop.f32.mrb[0].mxu0
        %v550 = vadd.f32 %v357, %v549
        %v551 = vpop.f32.mrb[0].mxu0
        %v552 = vadd.f32 %v357, %v551
        %v553 = vpop.f32.mrb[0].mxu0
        %v554 = vadd.f32 %v362, %v553
        %v555 = vpop.f32.mrb[0].mxu0
        %v556 = vadd.f32 %v362, %v555
        %557 = vdwg.mxu0
        %v558 = vadd.f32 %v480, %v482
        %559 = vadd.xlane.f32.xlu0 %v558
        %v560 = vpop.xlane.xlu0 %559
        %v561 = vadd.f32 %v484, %v486
        %562 = vadd.xlane.f32.xlu0 %v561
        %v563 = vpop.xlane.xlu0 %562
        %v564 = vadd.f32 %v490, %v492
        %565 = vadd.xlane.f32.xlu0 %v564
        %v566 = vpop.xlane.xlu0 %565
        %v567 = vadd.f32 %v494, %v496
        %568 = vadd.xlane.f32.xlu0 %v567
        %v569 = vpop.xlane.xlu0 %568
        %v570 = vadd.f32 %v500, %v502
        %571 = vadd.xlane.f32.xlu0 %v570
        %v572 = vpop.xlane.xlu0 %571
        %v573 = vadd.f32 %v504, %v506
        %574 = vadd.xlane.f32.xlu0 %v573
        %v575 = vpop.xlane.xlu0 %574
        %v576 = vadd.f32 %v510, %v512
        %577 = vadd.xlane.f32.xlu0 %v576
        %v578 = vpop.xlane.xlu0 %577
        %v579 = vadd.f32 %v514, %v516
        %580 = vadd.xlane.f32.xlu0 %v579
        %v581 = vpop.xlane.xlu0 %580
        %v582 = vadd.f32 %v520, %v522
        %583 = vadd.xlane.f32.xlu0 %v582
        %v584 = vpop.xlane.xlu0 %583
        %v585 = vadd.f32 %v524, %v526
        %586 = vadd.xlane.f32.xlu0 %v585
        %v587 = vpop.xlane.xlu0 %586
        %v588 = vadd.f32 %v530, %v532
        %589 = vadd.xlane.f32.xlu0 %v588
        %v590 = vpop.xlane.xlu0 %589
        %v591 = vadd.f32 %v534, %v536
        %592 = vadd.xlane.f32.xlu0 %v591
        %v593 = vpop.xlane.xlu0 %592
        %v594 = vadd.f32 %v540, %v542
        %595 = vadd.xlane.f32.xlu0 %v594
        %v596 = vpop.xlane.xlu0 %595
        %v597 = vadd.f32 %v544, %v546
        %598 = vadd.xlane.f32.xlu0 %v597
        %v599 = vpop.xlane.xlu0 %598
        %v600 = vadd.f32 %v550, %v552
        %601 = vadd.xlane.f32.xlu0 %v600
        %v602 = vpop.xlane.xlu0 %601
        %v603 = vadd.f32 %v554, %v556
        %604 = vadd.xlane.f32.xlu0 %v603
        %v605 = vpop.xlane.xlu0 %604
        %v606 = vmul.f32 %v560, 0.00390625
        %v607 = vmul.f32 %v563, 0.00390625
        %v608 = vmul.f32 %v566, 0.00390625
        %v609 = vmul.f32 %v569, 0.00390625
        %v610 = vmul.f32 %v572, 0.00390625
        %v611 = vmul.f32 %v575, 0.00390625
        %v612 = vmul.f32 %v578, 0.00390625
        %v613 = vmul.f32 %v581, 0.00390625
        %v614 = vmul.f32 %v584, 0.00390625
        %v615 = vmul.f32 %v587, 0.00390625
        %v616 = vmul.f32 %v590, 0.00390625
        %v617 = vmul.f32 %v593, 0.00390625
        %v618 = vmul.f32 %v596, 0.00390625
        %v619 = vmul.f32 %v599, 0.00390625
        %v620 = vmul.f32 %v602, 0.00390625
        %v621 = vmul.f32 %v605, 0.00390625
        %v622 = vld [vmem:[%s5] sm:$0xff]
        %v623 = vld [vmem:[%s5 + $0x8] sm:$0xff]
        %v624 = vld [vmem:[%s5 + $0x10] sm:$0xff]
        %v625 = vld [vmem:[%s5 + $0x18] sm:$0xff]
        %v626 = vld [vmem:[%s5 + $0x20] sm:$0xff]
        %v627 = vld [vmem:[%s5 + $0x28] sm:$0xff]
        %v628 = vld [vmem:[%s5 + $0x30] sm:$0xff]
        %v629 = vld [vmem:[%s5 + $0x38] sm:$0xff]
        %v630 = vld [vmem:[%s5 + $0x40] sm:$0xff]
        %v631 = vld [vmem:[%s5 + $0x48] sm:$0xff]
        %v632 = vld [vmem:[%s5 + $0x50] sm:$0xff]
        %v633 = vld [vmem:[%s5 + $0x58] sm:$0xff]
        %v634 = vld [vmem:[%s5 + $0x60] sm:$0xff]
        %v635 = vld [vmem:[%s5 + $0x68] sm:$0xff]
        %v636 = vld [vmem:[%s5 + $0x70] sm:$0xff]
        %v637 = vld [vmem:[%s5 + $0x78] sm:$0xff]
        %638 = vmatprep.subr.mxu0 0.0
        %639 = vmatpush1.msra.mxu0 %v606
        %640 = vmatprep.subr.mxu0 0.0
        %641 = vmatpush1.msra.mxu0 %v607
        %642 = vmatprep.subr.mxu0 0.0
        %643 = vmatpush1.msra.mxu0 %v608
        %644 = vmatprep.subr.mxu0 0.0
        %645 = vmatpush1.msra.mxu0 %v609
        %646 = vmatprep.subr.mxu0 0.0
        %647 = vmatpush1.msra.mxu0 %v610
        %648 = vmatprep.subr.mxu0 0.0
        %649 = vmatpush1.msra.mxu0 %v611
        %650 = vmatprep.subr.mxu0 0.0
        %651 = vmatpush1.msra.mxu0 %v612
        %652 = vmatprep.subr.mxu0 0.0
        %653 = vmatpush1.msra.mxu0 %v613
        %654 = vmatprep.subr.mxu0 0.0
        %655 = vmatpush1.msra.mxu0 %v614
        %656 = vmatprep.subr.mxu0 0.0
        %657 = vmatpush1.msra.mxu0 %v615
        %658 = vmatprep.subr.mxu0 0.0
        %659 = vmatpush1.msra.mxu0 %v616
        %660 = vmatprep.subr.mxu0 0.0
        %661 = vmatpush1.msra.mxu0 %v617
        %662 = vmatprep.subr.mxu0 0.0
        %663 = vmatpush1.msra.mxu0 %v618
        %664 = vmatprep.subr.mxu0 0.0
        %665 = vmatpush1.msra.mxu0 %v619
        %666 = vmatprep.subr.mxu0 0.0
        %667 = vmatpush1.msra.mxu0 %v620
        %668 = vmatprep.subr.mxu0 0.0
        %669 = vmatpush1.msra.mxu0 %v621
        %670 = vmatprep.subr.mxu0 0.0
        %671 = vmatpush1.msra.mxu0 0.0
        %672 = vmatprep.subr.mxu0 0.0
        %673 = vmatpush1.msra.mxu0 0.0
        %674 = vmatprep.subr.mxu0 0.0
        %675 = vmatpush1.msra.mxu0 0.0
        %676 = vmatprep.subr.mxu0 0.0
        %677 = vmatpush1.msra.mxu0 0.0
        %678 = vmatprep.subr.mxu0 0.0
        %679 = vmatpush1.msra.mxu0 0.0
        %680 = vmatprep.subr.mxu0 0.0
        %681 = vmatpush1.msra.mxu0 0.0
        %682 = vmatprep.subr.mxu0 0.0
        %683 = vmatpush1.msra.mxu0 0.0
        %684 = vmatprep.subr.mxu0 0.0
        %685 = vmatpush1.msra.mxu0 0.0
        %686 = vmatprep.subr.mxu0 0.0
        %687 = vmatpush1.msra.mxu0 0.0
        %688 = vmatprep.subr.mxu0 0.0
        %689 = vmatpush1.msra.mxu0 0.0
        %690 = vmatprep.subr.mxu0 0.0
        %691 = vmatpush1.msra.mxu0 0.0
        %692 = vmatprep.subr.mxu0 0.0
        %693 = vmatpush1.msra.mxu0 0.0
        %694 = vmatprep.subr.mxu0 0.0
        %695 = vmatpush1.msra.mxu0 0.0
        %696 = vmatprep.subr.mxu0 0.0
        %697 = vmatpush1.msra.mxu0 0.0
        %698 = vmatprep.subr.mxu0 0.0
        %699 = vmatpush1.msra.mxu0 0.0
        %700 = vmatprep.subr.mxu0 0.0
        %701 = vmatpush1.msra.mxu0 0.0
        %702 = vmatprep.mubr.f32.mxu0 0.0
        %703 = vmatmul.mubr.f32.gmra.mrb[0].mxu0 %v622
        %v704 = vpop.f32.mrb[0].mxu0
        %v705 = vadd.f32 0.0, %v704
        %v706 = vpop.f32.mrb[0].mxu0
        %707 = vmatprep.mubr.f32.mxu0 0.0
        %708 = vmatmul.mubr.f32.gmra.mrb[0].mxu0 %v623
        %v709 = vpop.f32.mrb[0].mxu0
        %v710 = vadd.f32 0.0, %v709
        %v711 = vpop.f32.mrb[0].mxu0
        %712 = vmatprep.mubr.f32.mxu0 0.0
        %713 = vmatmul.mubr.f32.gmra.mrb[0].mxu0 %v624
        %v714 = vpop.f32.mrb[0].mxu0
        %v715 = vadd.f32 0.0, %v714
        %v716 = vpop.f32.mrb[0].mxu0
        %717 = vmatprep.mubr.f32.mxu0 0.0
        %718 = vmatmul.mubr.f32.gmra.mrb[0].mxu0 %v625
        %v719 = vpop.f32.mrb[0].mxu0
        %v720 = vadd.f32 0.0, %v719
        %v721 = vpop.f32.mrb[0].mxu0
        %722 = vmatprep.mubr.f32.mxu0 0.0
        %723 = vmatmul.mubr.f32.gmra.mrb[0].mxu0 %v626
        %v724 = vpop.f32.mrb[0].mxu0
        %v725 = vadd.f32 0.0, %v724
        %v726 = vpop.f32.mrb[0].mxu0
        %727 = vmatprep.mubr.f32.mxu0 0.0
        %728 = vmatmul.mubr.f32.gmra.mrb[0].mxu0 %v627
        %v729 = vpop.f32.mrb[0].mxu0
        %v730 = vadd.f32 0.0, %v729
        %v731 = vpop.f32.mrb[0].mxu0
        %732 = vmatprep.mubr.f32.mxu0 0.0
        %733 = vmatmul.mubr.f32.gmra.mrb[0].mxu0 %v628
        %v734 = vpop.f32.mrb[0].mxu0
        %v735 = vadd.f32 0.0, %v734
        %v736 = vpop.f32.mrb[0].mxu0
        %737 = vmatprep.mubr.f32.mxu0 0.0
        %738 = vmatmul.mubr.f32.gmra.mrb[0].mxu0 %v629
        %v739 = vpop.f32.mrb[0].mxu0
        %v740 = vadd.f32 0.0, %v739
        %v741 = vpop.f32.mrb[0].mxu0
        %742 = vmatprep.mubr.f32.mxu0 0.0
        %743 = vmatmul.mubr.f32.gmra.mrb[0].mxu0 %v630
        %v744 = vpop.f32.mrb[0].mxu0
        %v745 = vadd.f32 0.0, %v744
        %v746 = vpop.f32.mrb[0].mxu0
        %747 = vmatprep.mubr.f32.mxu0 0.0
        %748 = vmatmul.mubr.f32.gmra.mrb[0].mxu0 %v631
        %v749 = vpop.f32.mrb[0].mxu0
        %v750 = vadd.f32 0.0, %v749
        %v751 = vpop.f32.mrb[0].mxu0
        %752 = vmatprep.mubr.f32.mxu0 0.0
        %753 = vmatmul.mubr.f32.gmra.mrb[0].mxu0 %v632
        %v754 = vpop.f32.mrb[0].mxu0
        %v755 = vadd.f32 0.0, %v754
        %v756 = vpop.f32.mrb[0].mxu0
        %757 = vmatprep.mubr.f32.mxu0 0.0
        %758 = vmatmul.mubr.f32.gmra.mrb[0].mxu0 %v633
        %v759 = vpop.f32.mrb[0].mxu0
        %v760 = vadd.f32 0.0, %v759
        %v761 = vpop.f32.mrb[0].mxu0
        %762 = vmatprep.mubr.f32.mxu0 0.0
        %763 = vmatmul.mubr.f32.gmra.mrb[0].mxu0 %v634
        %v764 = vpop.f32.mrb[0].mxu0
        %v765 = vadd.f32 0.0, %v764
        %v766 = vpop.f32.mrb[0].mxu0
        %767 = vmatprep.mubr.f32.mxu0 0.0
        %768 = vmatmul.mubr.f32.gmra.mrb[0].mxu0 %v635
        %v769 = vpop.f32.mrb[0].mxu0
        %v770 = vadd.f32 0.0, %v769
        %v771 = vpop.f32.mrb[0].mxu0
        %772 = vmatprep.mubr.f32.mxu0 0.0
        %773 = vmatmul.mubr.f32.gmra.mrb[0].mxu0 %v636
        %v774 = vpop.f32.mrb[0].mxu0
        %v775 = vadd.f32 0.0, %v774
        %v776 = vpop.f32.mrb[0].mxu0
        %777 = vmatprep.mubr.f32.mxu0 0.0
        %778 = vmatmul.mubr.f32.gmra.mrb[0].mxu0 %v637
        %v779 = vpop.f32.mrb[0].mxu0
        %v780 = vadd.f32 0.0, %v779
        %v781 = vpop.f32.mrb[0].mxu0
        %782 = vdwg.mxu0
        %784 = vset.pattern.permute.xlu0 0
        %785 = vperm.xlu0 %784, %v705
        %v786 = vpop.permute.xlu0 %785
        %789 = vset.pattern.permute.xlu0 0
        %790 = vperm.xlu0 %789, %v710
        %v791 = vpop.permute.xlu0 %790
        %794 = vset.pattern.permute.xlu0 0
        %795 = vperm.xlu0 %794, %v715
        %v796 = vpop.permute.xlu0 %795
        %799 = vset.pattern.permute.xlu0 0
        %800 = vperm.xlu0 %799, %v720
        %v801 = vpop.permute.xlu0 %800
        %804 = vset.pattern.permute.xlu0 0
        %805 = vperm.xlu0 %804, %v725
        %v806 = vpop.permute.xlu0 %805
        %809 = vset.pattern.permute.xlu0 0
        %810 = vperm.xlu0 %809, %v730
        %v811 = vpop.permute.xlu0 %810
        %814 = vset.pattern.permute.xlu0 0
        %815 = vperm.xlu0 %814, %v735
        %v816 = vpop.permute.xlu0 %815
        %819 = vset.pattern.permute.xlu0 0
        %820 = vperm.xlu0 %819, %v740
        %v821 = vpop.permute.xlu0 %820
        %824 = vset.pattern.permute.xlu0 0
        %825 = vperm.xlu0 %824, %v745
        %v826 = vpop.permute.xlu0 %825
        %829 = vset.pattern.permute.xlu0 0
        %830 = vperm.xlu0 %829, %v750
        %v831 = vpop.permute.xlu0 %830
        %834 = vset.pattern.permute.xlu0 0
        %835 = vperm.xlu0 %834, %v755
        %v836 = vpop.permute.xlu0 %835
        %839 = vset.pattern.permute.xlu0 0
        %840 = vperm.xlu0 %839, %v760
        %v841 = vpop.permute.xlu0 %840
        %844 = vset.pattern.permute.xlu0 0
        %845 = vperm.xlu0 %844, %v765
        %v846 = vpop.permute.xlu0 %845
        %849 = vset.pattern.permute.xlu0 0
        %850 = vperm.xlu0 %849, %v770
        %v851 = vpop.permute.xlu0 %850
        %854 = vset.pattern.permute.xlu0 0
        %855 = vperm.xlu0 %854, %v775
        %v856 = vpop.permute.xlu0 %855
        %859 = vset.pattern.permute.xlu0 0
        %860 = vperm.xlu0 %859, %v780
        %v861 = vpop.permute.xlu0 %860
        %v863 = vsub.f32 %v480, %v786
        %v864 = vsub.f32 %v482, %v786
        %v865 = vsub.f32 %v484, %v791
        %v866 = vsub.f32 %v486, %v791
        %v867 = vsub.f32 %v490, %v796
        %v868 = vsub.f32 %v492, %v796
        %v869 = vsub.f32 %v494, %v801
        %v870 = vsub.f32 %v496, %v801
        %v871 = vsub.f32 %v500, %v806
        %v872 = vsub.f32 %v502, %v806
        %v873 = vsub.f32 %v504, %v811
        %v874 = vsub.f32 %v506, %v811
        %v875 = vsub.f32 %v510, %v816
        %v876 = vsub.f32 %v512, %v816
        %v877 = vsub.f32 %v514, %v821
        %v878 = vsub.f32 %v516, %v821
        %v879 = vsub.f32 %v520, %v826
        %v880 = vsub.f32 %v522, %v826
        %v881 = vsub.f32 %v524, %v831
        %v882 = vsub.f32 %v526, %v831
        %v883 = vsub.f32 %v530, %v836
        %v884 = vsub.f32 %v532, %v836
        %v885 = vsub.f32 %v534, %v841
        %v886 = vsub.f32 %v536, %v841
        %v887 = vsub.f32 %v540, %v846
        %v888 = vsub.f32 %v542, %v846
        %v889 = vsub.f32 %v544, %v851
        %v890 = vsub.f32 %v546, %v851
        %v891 = vsub.f32 %v550, %v856
        %v892 = vsub.f32 %v552, %v856
        %v893 = vsub.f32 %v554, %v861
        %v894 = vsub.f32 %v556, %v861
        %v895 = vmul.f32 %v863, %v863
        %v896 = vmul.f32 %v864, %v864
        %v897 = vmul.f32 %v865, %v865
        %v898 = vmul.f32 %v866, %v866
        %v899 = vmul.f32 %v867, %v867
        %v900 = vmul.f32 %v868, %v868
        %v901 = vmul.f32 %v869, %v869
        %v902 = vmul.f32 %v870, %v870
        %v903 = vmul.f32 %v871, %v871
        %v904 = vmul.f32 %v872, %v872
        %v905 = vmul.f32 %v873, %v873
        %v906 = vmul.f32 %v874, %v874
        %v907 = vmul.f32 %v875, %v875
        %v908 = vmul.f32 %v876, %v876
        %v909 = vmul.f32 %v877, %v877
        %v910 = vmul.f32 %v878, %v878
        %v911 = vmul.f32 %v879, %v879
        %v912 = vmul.f32 %v880, %v880
        %v913 = vmul.f32 %v881, %v881
        %v914 = vmul.f32 %v882, %v882
        %v915 = vmul.f32 %v883, %v883
        %v916 = vmul.f32 %v884, %v884
        %v917 = vmul.f32 %v885, %v885
        %v918 = vmul.f32 %v886, %v886
        %v919 = vmul.f32 %v887, %v887
        %v920 = vmul.f32 %v888, %v888
        %v921 = vmul.f32 %v889, %v889
        %v922 = vmul.f32 %v890, %v890
        %v923 = vmul.f32 %v891, %v891
        %v924 = vmul.f32 %v892, %v892
        %v925 = vmul.f32 %v893, %v893
        %v926 = vmul.f32 %v894, %v894
        %v927 = vadd.f32 %v895, %v896
        %928 = vadd.xlane.f32.xlu0 %v927
        %v929 = vpop.xlane.xlu0 %928
        %v930 = vadd.f32 %v897, %v898
        %931 = vadd.xlane.f32.xlu0 %v930
        %v932 = vpop.xlane.xlu0 %931
        %v933 = vadd.f32 %v899, %v900
        %934 = vadd.xlane.f32.xlu0 %v933
        %v935 = vpop.xlane.xlu0 %934
        %v936 = vadd.f32 %v901, %v902
        %937 = vadd.xlane.f32.xlu0 %v936
        %v938 = vpop.xlane.xlu0 %937
        %v939 = vadd.f32 %v903, %v904
        %940 = vadd.xlane.f32.xlu0 %v939
        %v941 = vpop.xlane.xlu0 %940
        %v942 = vadd.f32 %v905, %v906
        %943 = vadd.xlane.f32.xlu0 %v942
        %v944 = vpop.xlane.xlu0 %943
        %v945 = vadd.f32 %v907, %v908
        %946 = vadd.xlane.f32.xlu0 %v945
        %v947 = vpop.xlane.xlu0 %946
        %v948 = vadd.f32 %v909, %v910
        %949 = vadd.xlane.f32.xlu0 %v948
        %v950 = vpop.xlane.xlu0 %949
        %v951 = vadd.f32 %v911, %v912
        %952 = vadd.xlane.f32.xlu0 %v951
        %v953 = vpop.xlane.xlu0 %952
        %v954 = vadd.f32 %v913, %v914
        %955 = vadd.xlane.f32.xlu0 %v954
        %v956 = vpop.xlane.xlu0 %955
        %v957 = vadd.f32 %v915, %v916
        %958 = vadd.xlane.f32.xlu0 %v957
        %v959 = vpop.xlane.xlu0 %958
        %v960 = vadd.f32 %v917, %v918
        %961 = vadd.xlane.f32.xlu0 %v960
        %v962 = vpop.xlane.xlu0 %961
        %v963 = vadd.f32 %v919, %v920
        %964 = vadd.xlane.f32.xlu0 %v963
        %v965 = vpop.xlane.xlu0 %964
        %v966 = vadd.f32 %v921, %v922
        %967 = vadd.xlane.f32.xlu0 %v966
        %v968 = vpop.xlane.xlu0 %967
        %v969 = vadd.f32 %v923, %v924
        %970 = vadd.xlane.f32.xlu0 %v969
        %v971 = vpop.xlane.xlu0 %970
        %v972 = vadd.f32 %v925, %v926
        %973 = vadd.xlane.f32.xlu0 %v972
        %v974 = vpop.xlane.xlu0 %973
        %v975 = vmul.f32 %v929, 0.00390625
        %v976 = vmul.f32 %v932, 0.00390625
        %v977 = vmul.f32 %v935, 0.00390625
        %v978 = vmul.f32 %v938, 0.00390625
        %v979 = vmul.f32 %v941, 0.00390625
        %v980 = vmul.f32 %v944, 0.00390625
        %v981 = vmul.f32 %v947, 0.00390625
        %v982 = vmul.f32 %v950, 0.00390625
        %v983 = vmul.f32 %v953, 0.00390625
        %v984 = vmul.f32 %v956, 0.00390625
        %v985 = vmul.f32 %v959, 0.00390625
        %v986 = vmul.f32 %v962, 0.00390625
        %v987 = vmul.f32 %v965, 0.00390625
        %v988 = vmul.f32 %v968, 0.00390625
        %v989 = vmul.f32 %v971, 0.00390625
        %v990 = vmul.f32 %v974, 0.00390625
        %991 = vmatprep.subr.mxu0 0.0
        %992 = vmatpush1.msra.mxu0 %v975
        %993 = vmatprep.subr.mxu0 0.0
        %994 = vmatpush1.msra.mxu0 %v976
        %995 = vmatprep.subr.mxu0 0.0
        %996 = vmatpush1.msra.mxu0 %v977
        %997 = vmatprep.subr.mxu0 0.0
        %998 = vmatpush1.msra.mxu0 %v978
        %999 = vmatprep.subr.mxu0 0.0
        %1000 = vmatpush1.msra.mxu0 %v979
        %1001 = vmatprep.subr.mxu0 0.0
        %1002 = vmatpush1.msra.mxu0 %v980
        %1003 = vmatprep.subr.mxu0 0.0
        %1004 = vmatpush1.msra.mxu0 %v981
        %1005 = vmatprep.subr.mxu0 0.0
        %1006 = vmatpush1.msra.mxu0 %v982
        %1007 = vmatprep.subr.mxu0 0.0
        %1008 = vmatpush1.msra.mxu0 %v983
        %1009 = vmatprep.subr.mxu0 0.0
        %1010 = vmatpush1.msra.mxu0 %v984
        %1011 = vmatprep.subr.mxu0 0.0
        %1012 = vmatpush1.msra.mxu0 %v985
        %1013 = vmatprep.subr.mxu0 0.0
        %1014 = vmatpush1.msra.mxu0 %v986
        %1015 = vmatprep.subr.mxu0 0.0
        %1016 = vmatpush1.msra.mxu0 %v987
        %1017 = vmatprep.subr.mxu0 0.0
        %1018 = vmatpush1.msra.mxu0 %v988
        %1019 = vmatprep.subr.mxu0 0.0
        %1020 = vmatpush1.msra.mxu0 %v989
        %1021 = vmatprep.subr.mxu0 0.0
        %1022 = vmatpush1.msra.mxu0 %v990
        %1023 = vmatprep.subr.mxu0 0.0
        %1024 = vmatpush1.msra.mxu0 0.0
        %1025 = vmatprep.subr.mxu0 0.0
        %1026 = vmatpush1.msra.mxu0 0.0
        %1027 = vmatprep.subr.mxu0 0.0
        %1028 = vmatpush1.msra.mxu0 0.0
        %1029 = vmatprep.subr.mxu0 0.0
        %1030 = vmatpush1.msra.mxu0 0.0
        %1031 = vmatprep.subr.mxu0 0.0
        %1032 = vmatpush1.msra.mxu0 0.0
        %1033 = vmatprep.subr.mxu0 0.0
        %1034 = vmatpush1.msra.mxu0 0.0
        %1035 = vmatprep.subr.mxu0 0.0
        %1036 = vmatpush1.msra.mxu0 0.0
        %1037 = vmatprep.subr.mxu0 0.0
        %1038 = vmatpush1.msra.mxu0 0.0
        %1039 = vmatprep.subr.mxu0 0.0
        %1040 = vmatpush1.msra.mxu0 0.0
        %1041 = vmatprep.subr.mxu0 0.0
        %1042 = vmatpush1.msra.mxu0 0.0
        %1043 = vmatprep.subr.mxu0 0.0
        %1044 = vmatpush1.msra.mxu0 0.0
        %1045 = vmatprep.subr.mxu0 0.0
        %1046 = vmatpush1.msra.mxu0 0.0
        %1047 = vmatprep.subr.mxu0 0.0
        %1048 = vmatpush1.msra.mxu0 0.0
        %1049 = vmatprep.subr.mxu0 0.0
        %1050 = vmatpush1.msra.mxu0 0.0
        %1051 = vmatprep.subr.mxu0 0.0
        %1052 = vmatpush1.msra.mxu0 0.0
        %1053 = vmatprep.subr.mxu0 0.0
        %1054 = vmatpush1.msra.mxu0 0.0
        %1055 = vmatprep.mubr.f32.mxu0 0.0
        %1056 = vmatmul.mubr.f32.gmra.mrb[0].mxu0 %v622
        %v1057 = vpop.f32.mrb[0].mxu0
        %v1058 = vadd.f32 1e-05, %v1057
        %v1059 = vpop.f32.mrb[0].mxu0
        %1060 = vmatprep.mubr.f32.mxu0 0.0
        %1061 = vmatmul.mubr.f32.gmra.mrb[0].mxu0 %v623
        %v1062 = vpop.f32.mrb[0].mxu0
        %v1063 = vadd.f32 1e-05, %v1062
        %v1064 = vpop.f32.mrb[0].mxu0
        %1065 = vmatprep.mubr.f32.mxu0 0.0
        %1066 = vmatmul.mubr.f32.gmra.mrb[0].mxu0 %v624
        %v1067 = vpop.f32.mrb[0].mxu0
        %v1068 = vadd.f32 1e-05, %v1067
        %v1069 = vpop.f32.mrb[0].mxu0
        %1070 = vmatprep.mubr.f32.mxu0 0.0
        %1071 = vmatmul.mubr.f32.gmra.mrb[0].mxu0 %v625
        %v1072 = vpop.f32.mrb[0].mxu0
        %v1073 = vadd.f32 1e-05, %v1072
        %v1074 = vpop.f32.mrb[0].mxu0
        %1075 = vmatprep.mubr.f32.mxu0 0.0
        %1076 = vmatmul.mubr.f32.gmra.mrb[0].mxu0 %v626
        %v1077 = vpop.f32.mrb[0].mxu0
        %v1078 = vadd.f32 1e-05, %v1077
        %v1079 = vpop.f32.mrb[0].mxu0
        %1080 = vmatprep.mubr.f32.mxu0 0.0
        %1081 = vmatmul.mubr.f32.gmra.mrb[0].mxu0 %v627
        %v1082 = vpop.f32.mrb[0].mxu0
        %v1083 = vadd.f32 1e-05, %v1082
        %v1084 = vpop.f32.mrb[0].mxu0
        %1085 = vmatprep.mubr.f32.mxu0 0.0
        %1086 = vmatmul.mubr.f32.gmra.mrb[0].mxu0 %v628
        %v1087 = vpop.f32.mrb[0].mxu0
        %v1088 = vadd.f32 1e-05, %v1087
        %v1089 = vpop.f32.mrb[0].mxu0
        %1090 = vmatprep.mubr.f32.mxu0 0.0
        %1091 = vmatmul.mubr.f32.gmra.mrb[0].mxu0 %v629
        %v1092 = vpop.f32.mrb[0].mxu0
        %v1093 = vadd.f32 1e-05, %v1092
        %v1094 = vpop.f32.mrb[0].mxu0
        %1095 = vmatprep.mubr.f32.mxu0 0.0
        %1096 = vmatmul.mubr.f32.gmra.mrb[0].mxu0 %v630
        %v1097 = vpop.f32.mrb[0].mxu0
        %v1098 = vadd.f32 1e-05, %v1097
        %v1099 = vpop.f32.mrb[0].mxu0
        %1100 = vmatprep.mubr.f32.mxu0 0.0
        %1101 = vmatmul.mubr.f32.gmra.mrb[0].mxu0 %v631
        %v1102 = vpop.f32.mrb[0].mxu0
        %v1103 = vadd.f32 1e-05, %v1102
        %v1104 = vpop.f32.mrb[0].mxu0
        %1105 = vmatprep.mubr.f32.mxu0 0.0
        %1106 = vmatmul.mubr.f32.gmra.mrb[0].mxu0 %v632
        %v1107 = vpop.f32.mrb[0].mxu0
        %v1108 = vadd.f32 1e-05, %v1107
        %v1109 = vpop.f32.mrb[0].mxu0
        %1110 = vmatprep.mubr.f32.mxu0 0.0
        %1111 = vmatmul.mubr.f32.gmra.mrb[0].mxu0 %v633
        %v1112 = vpop.f32.mrb[0].mxu0
        %v1113 = vadd.f32 1e-05, %v1112
        %v1114 = vpop.f32.mrb[0].mxu0
        %1115 = vmatprep.mubr.f32.mxu0 0.0
        %1116 = vmatmul.mubr.f32.gmra.mrb[0].mxu0 %v634
        %v1117 = vpop.f32.mrb[0].mxu0
        %v1118 = vadd.f32 1e-05, %v1117
        %v1119 = vpop.f32.mrb[0].mxu0
        %1120 = vmatprep.mubr.f32.mxu0 0.0
        %1121 = vmatmul.mubr.f32.gmra.mrb[0].mxu0 %v635
        %v1122 = vpop.f32.mrb[0].mxu0
        %v1123 = vadd.f32 1e-05, %v1122
        %v1124 = vpop.f32.mrb[0].mxu0
        %1125 = vmatprep.mubr.f32.mxu0 0.0
        %1126 = vmatmul.mubr.f32.gmra.mrb[0].mxu0 %v636
        %v1127 = vpop.f32.mrb[0].mxu0
        %v1128 = vadd.f32 1e-05, %v1127
        %v1129 = vpop.f32.mrb[0].mxu0
        %1130 = vmatprep.mubr.f32.mxu0 0.0
        %1131 = vmatmul.mubr.f32.gmra.mrb[0].mxu0 %v637
        %v1132 = vpop.f32.mrb[0].mxu0
        %v1133 = vadd.f32 1e-05, %v1132
        %v1134 = vpop.f32.mrb[0].mxu0
        %1135 = vdwg.mxu0
        %v1136 = vrsqrt.pop %v1058
        %v1137 = vrsqrt.pop %v1063
        %v1138 = vrsqrt.pop %v1068
        %v1139 = vrsqrt.pop %v1073
        %v1140 = vrsqrt.pop %v1078
        %v1141 = vrsqrt.pop %v1083
        %v1142 = vrsqrt.pop %v1088
        %v1143 = vrsqrt.pop %v1093
        %v1144 = vrsqrt.pop %v1098
        %v1145 = vrsqrt.pop %v1103
        %v1146 = vrsqrt.pop %v1108
        %v1147 = vrsqrt.pop %v1113
        %v1148 = vrsqrt.pop %v1118
        %v1149 = vrsqrt.pop %v1123
        %v1150 = vrsqrt.pop %v1128
        %v1151 = vrsqrt.pop %v1133
        %1153 = vset.pattern.permute.xlu0 0
        %1154 = vperm.xlu0 %1153, %v1136
        %v1155 = vpop.permute.xlu0 %1154
        %1158 = vset.pattern.permute.xlu0 0
        %1159 = vperm.xlu0 %1158, %v1137
        %v1160 = vpop.permute.xlu0 %1159
        %1163 = vset.pattern.permute.xlu0 0
        %1164 = vperm.xlu0 %1163, %v1138
        %v1165 = vpop.permute.xlu0 %1164
        %1168 = vset.pattern.permute.xlu0 0
        %1169 = vperm.xlu0 %1168, %v1139
        %v1170 = vpop.permute.xlu0 %1169
        %1173 = vset.pattern.permute.xlu0 0
        %1174 = vperm.xlu0 %1173, %v1140
        %v1175 = vpop.permute.xlu0 %1174
        %1178 = vset.pattern.permute.xlu0 0
        %1179 = vperm.xlu0 %1178, %v1141
        %v1180 = vpop.permute.xlu0 %1179
        %1183 = vset.pattern.permute.xlu0 0
        %1184 = vperm.xlu0 %1183, %v1142
        %v1185 = vpop.permute.xlu0 %1184
        %1188 = vset.pattern.permute.xlu0 0
        %1189 = vperm.xlu0 %1188, %v1143
        %v1190 = vpop.permute.xlu0 %1189
        %1193 = vset.pattern.permute.xlu0 0
        %1194 = vperm.xlu0 %1193, %v1144
        %v1195 = vpop.permute.xlu0 %1194
        %1198 = vset.pattern.permute.xlu0 0
        %1199 = vperm.xlu0 %1198, %v1145
        %v1200 = vpop.permute.xlu0 %1199
        %1203 = vset.pattern.permute.xlu0 0
        %1204 = vperm.xlu0 %1203, %v1146
        %v1205 = vpop.permute.xlu0 %1204
        %1208 = vset.pattern.permute.xlu0 0
        %1209 = vperm.xlu0 %1208, %v1147
        %v1210 = vpop.permute.xlu0 %1209
        %1213 = vset.pattern.permute.xlu0 0
        %1214 = vperm.xlu0 %1213, %v1148
        %v1215 = vpop.permute.xlu0 %1214
        %1218 = vset.pattern.permute.xlu0 0
        %1219 = vperm.xlu0 %1218, %v1149
        %v1220 = vpop.permute.xlu0 %1219
        %1223 = vset.pattern.permute.xlu0 0
        %1224 = vperm.xlu0 %1223, %v1150
        %v1225 = vpop.permute.xlu0 %1224
        %1228 = vset.pattern.permute.xlu0 0
        %1229 = vperm.xlu0 %1228, %v1151
        %v1230 = vpop.permute.xlu0 %1229
        %v1232 = vmul.f32 %v863, %v1155
        %v1233 = vmul.f32 %v864, %v1155
        %v1234 = vmul.f32 %v865, %v1160
        %v1235 = vmul.f32 %v866, %v1160
        %v1236 = vmul.f32 %v867, %v1165
        %v1237 = vmul.f32 %v868, %v1165
        %v1238 = vmul.f32 %v869, %v1170
        %v1239 = vmul.f32 %v870, %v1170
        %v1240 = vmul.f32 %v871, %v1175
        %v1241 = vmul.f32 %v872, %v1175
        %v1242 = vmul.f32 %v873, %v1180
        %v1243 = vmul.f32 %v874, %v1180
        %v1244 = vmul.f32 %v875, %v1185
        %v1245 = vmul.f32 %v876, %v1185
        %v1246 = vmul.f32 %v877, %v1190
        %v1247 = vmul.f32 %v878, %v1190
        %v1248 = vmul.f32 %v879, %v1195
        %v1249 = vmul.f32 %v880, %v1195
        %v1250 = vmul.f32 %v881, %v1200
        %v1251 = vmul.f32 %v882, %v1200
        %v1252 = vmul.f32 %v883, %v1205
        %v1253 = vmul.f32 %v884, %v1205
        %v1254 = vmul.f32 %v885, %v1210
        %v1255 = vmul.f32 %v886, %v1210
        %v1256 = vmul.f32 %v887, %v1215
        %v1257 = vmul.f32 %v888, %v1215
        %v1258 = vmul.f32 %v889, %v1220
        %v1259 = vmul.f32 %v890, %v1220
        %v1260 = vmul.f32 %v891, %v1225
        %v1261 = vmul.f32 %v892, %v1225
        %v1262 = vmul.f32 %v893, %v1230
        %v1263 = vmul.f32 %v894, %v1230
        %v1264 = vld [vmem:[%s3] sm:$0xff]
        %v1265 = vld [vmem:[%s3 + $0x8] sm:$0xff]
        %v1266 = vld [vmem:[%s3 + $0x10] sm:$0xff]
        %v1267 = vld [vmem:[%s3 + $0x18] sm:$0xff]
        %v1268 = vld [vmem:[%s3 + $0x20] sm:$0xff]
        %v1269 = vld [vmem:[%s3 + $0x28] sm:$0xff]
        %v1270 = vld [vmem:[%s3 + $0x30] sm:$0xff]
        %v1271 = vld [vmem:[%s3 + $0x38] sm:$0xff]
        %v1272 = vld [vmem:[%s3 + $0x40] sm:$0xff]
        %v1273 = vld [vmem:[%s3 + $0x48] sm:$0xff]
        %v1274 = vld [vmem:[%s3 + $0x50] sm:$0xff]
        %v1275 = vld [vmem:[%s3 + $0x58] sm:$0xff]
        %v1276 = vld [vmem:[%s3 + $0x60] sm:$0xff]
        %v1277 = vld [vmem:[%s3 + $0x68] sm:$0xff]
        %v1278 = vld [vmem:[%s3 + $0x70] sm:$0xff]
        %v1279 = vld [vmem:[%s3 + $0x78] sm:$0xff]
        %1281 = vset.pattern.permute.xlu0 0
        %1282 = vperm.xlu0 %1281, %v1264
        %v1283 = vpop.permute.xlu0 %1282
        %1286 = vset.pattern.permute.xlu0 0
        %1287 = vperm.xlu0 %1286, %v1265
        %v1288 = vpop.permute.xlu0 %1287
        %1291 = vset.pattern.permute.xlu0 0
        %1292 = vperm.xlu0 %1291, %v1266
        %v1293 = vpop.permute.xlu0 %1292
        %1296 = vset.pattern.permute.xlu0 0
        %1297 = vperm.xlu0 %1296, %v1267
        %v1298 = vpop.permute.xlu0 %1297
        %1301 = vset.pattern.permute.xlu0 0
        %1302 = vperm.xlu0 %1301, %v1268
        %v1303 = vpop.permute.xlu0 %1302
        %1306 = vset.pattern.permute.xlu0 0
        %1307 = vperm.xlu0 %1306, %v1269
        %v1308 = vpop.permute.xlu0 %1307
        %1311 = vset.pattern.permute.xlu0 0
        %1312 = vperm.xlu0 %1311, %v1270
        %v1313 = vpop.permute.xlu0 %1312
        %1316 = vset.pattern.permute.xlu0 0
        %1317 = vperm.xlu0 %1316, %v1271
        %v1318 = vpop.permute.xlu0 %1317
        %1321 = vset.pattern.permute.xlu0 0
        %1322 = vperm.xlu0 %1321, %v1272
        %v1323 = vpop.permute.xlu0 %1322
        %1326 = vset.pattern.permute.xlu0 0
        %1327 = vperm.xlu0 %1326, %v1273
        %v1328 = vpop.permute.xlu0 %1327
        %1331 = vset.pattern.permute.xlu0 0
        %1332 = vperm.xlu0 %1331, %v1274
        %v1333 = vpop.permute.xlu0 %1332
        %1336 = vset.pattern.permute.xlu0 0
        %1337 = vperm.xlu0 %1336, %v1275
        %v1338 = vpop.permute.xlu0 %1337
        %1341 = vset.pattern.permute.xlu0 0
        %1342 = vperm.xlu0 %1341, %v1276
        %v1343 = vpop.permute.xlu0 %1342
        %1346 = vset.pattern.permute.xlu0 0
        %1347 = vperm.xlu0 %1346, %v1277
        %v1348 = vpop.permute.xlu0 %1347
        %1351 = vset.pattern.permute.xlu0 0
        %1352 = vperm.xlu0 %1351, %v1278
        %v1353 = vpop.permute.xlu0 %1352
        %1356 = vset.pattern.permute.xlu0 0
        %1357 = vperm.xlu0 %1356, %v1279
        %v1358 = vpop.permute.xlu0 %1357
        %v1360 = vmul.f32 %v1232, %v1283
        %v1361 = vmul.f32 %v1233, %v1283
        %v1362 = vmul.f32 %v1234, %v1288
        %v1363 = vmul.f32 %v1235, %v1288
        %v1364 = vmul.f32 %v1236, %v1293
        %v1365 = vmul.f32 %v1237, %v1293
        %v1366 = vmul.f32 %v1238, %v1298
        %v1367 = vmul.f32 %v1239, %v1298
        %v1368 = vmul.f32 %v1240, %v1303
        %v1369 = vmul.f32 %v1241, %v1303
        %v1370 = vmul.f32 %v1242, %v1308
        %v1371 = vmul.f32 %v1243, %v1308
        %v1372 = vmul.f32 %v1244, %v1313
        %v1373 = vmul.f32 %v1245, %v1313
        %v1374 = vmul.f32 %v1246, %v1318
        %v1375 = vmul.f32 %v1247, %v1318
        %v1376 = vmul.f32 %v1248, %v1323
        %v1377 = vmul.f32 %v1249, %v1323
        %v1378 = vmul.f32 %v1250, %v1328
        %v1379 = vmul.f32 %v1251, %v1328
        %v1380 = vmul.f32 %v1252, %v1333
        %v1381 = vmul.f32 %v1253, %v1333
        %v1382 = vmul.f32 %v1254, %v1338
        %v1383 = vmul.f32 %v1255, %v1338
        %v1384 = vmul.f32 %v1256, %v1343
        %v1385 = vmul.f32 %v1257, %v1343
        %v1386 = vmul.f32 %v1258, %v1348
        %v1387 = vmul.f32 %v1259, %v1348
        %v1388 = vmul.f32 %v1260, %v1353
        %v1389 = vmul.f32 %v1261, %v1353
        %v1390 = vmul.f32 %v1262, %v1358
        %v1391 = vmul.f32 %v1263, %v1358
        %v1392 = vld [vmem:[%s4] sm:$0xff]
        %v1393 = vld [vmem:[%s4 + $0x8] sm:$0xff]
        %v1394 = vld [vmem:[%s4 + $0x10] sm:$0xff]
        %v1395 = vld [vmem:[%s4 + $0x18] sm:$0xff]
        %v1396 = vld [vmem:[%s4 + $0x20] sm:$0xff]
        %v1397 = vld [vmem:[%s4 + $0x28] sm:$0xff]
        %v1398 = vld [vmem:[%s4 + $0x30] sm:$0xff]
        %v1399 = vld [vmem:[%s4 + $0x38] sm:$0xff]
        %v1400 = vld [vmem:[%s4 + $0x40] sm:$0xff]
        %v1401 = vld [vmem:[%s4 + $0x48] sm:$0xff]
        %v1402 = vld [vmem:[%s4 + $0x50] sm:$0xff]
        %v1403 = vld [vmem:[%s4 + $0x58] sm:$0xff]
        %v1404 = vld [vmem:[%s4 + $0x60] sm:$0xff]
        %v1405 = vld [vmem:[%s4 + $0x68] sm:$0xff]
        %v1406 = vld [vmem:[%s4 + $0x70] sm:$0xff]
        %v1407 = vld [vmem:[%s4 + $0x78] sm:$0xff]
        %1409 = vset.pattern.permute.xlu0 0
        %1410 = vperm.xlu0 %1409, %v1392
        %v1411 = vpop.permute.xlu0 %1410
        %1414 = vset.pattern.permute.xlu0 0
        %1415 = vperm.xlu0 %1414, %v1393
        %v1416 = vpop.permute.xlu0 %1415
        %1419 = vset.pattern.permute.xlu0 0
        %1420 = vperm.xlu0 %1419, %v1394
        %v1421 = vpop.permute.xlu0 %1420
        %1424 = vset.pattern.permute.xlu0 0
        %1425 = vperm.xlu0 %1424, %v1395
        %v1426 = vpop.permute.xlu0 %1425
        %1429 = vset.pattern.permute.xlu0 0
        %1430 = vperm.xlu0 %1429, %v1396
        %v1431 = vpop.permute.xlu0 %1430
        %1434 = vset.pattern.permute.xlu0 0
        %1435 = vperm.xlu0 %1434, %v1397
        %v1436 = vpop.permute.xlu0 %1435
        %1439 = vset.pattern.permute.xlu0 0
        %1440 = vperm.xlu0 %1439, %v1398
        %v1441 = vpop.permute.xlu0 %1440
        %1444 = vset.pattern.permute.xlu0 0
        %1445 = vperm.xlu0 %1444, %v1399
        %v1446 = vpop.permute.xlu0 %1445
        %1449 = vset.pattern.permute.xlu0 0
        %1450 = vperm.xlu0 %1449, %v1400
        %v1451 = vpop.permute.xlu0 %1450
        %1454 = vset.pattern.permute.xlu0 0
        %1455 = vperm.xlu0 %1454, %v1401
        %v1456 = vpop.permute.xlu0 %1455
        %1459 = vset.pattern.permute.xlu0 0
        %1460 = vperm.xlu0 %1459, %v1402
        %v1461 = vpop.permute.xlu0 %1460
        %1464 = vset.pattern.permute.xlu0 0
        %1465 = vperm.xlu0 %1464, %v1403
        %v1466 = vpop.permute.xlu0 %1465
        %1469 = vset.pattern.permute.xlu0 0
        %1470 = vperm.xlu0 %1469, %v1404
        %v1471 = vpop.permute.xlu0 %1470
        %1474 = vset.pattern.permute.xlu0 0
        %1475 = vperm.xlu0 %1474, %v1405
        %v1476 = vpop.permute.xlu0 %1475
        %1479 = vset.pattern.permute.xlu0 0
        %1480 = vperm.xlu0 %1479, %v1406
        %v1481 = vpop.permute.xlu0 %1480
        %1484 = vset.pattern.permute.xlu0 0
        %1485 = vperm.xlu0 %1484, %v1407
        %v1486 = vpop.permute.xlu0 %1485
        %v1488 = vadd.f32 %v1360, %v1411
        %v1489 = vadd.f32 %v1361, %v1411
        %v1490 = vadd.f32 %v1362, %v1416
        %v1491 = vadd.f32 %v1363, %v1416
        %v1492 = vadd.f32 %v1364, %v1421
        %v1493 = vadd.f32 %v1365, %v1421
        %v1494 = vadd.f32 %v1366, %v1426
        %v1495 = vadd.f32 %v1367, %v1426
        %v1496 = vadd.f32 %v1368, %v1431
        %v1497 = vadd.f32 %v1369, %v1431
        %v1498 = vadd.f32 %v1370, %v1436
        %v1499 = vadd.f32 %v1371, %v1436
        %v1500 = vadd.f32 %v1372, %v1441
        %v1501 = vadd.f32 %v1373, %v1441
        %v1502 = vadd.f32 %v1374, %v1446
        %v1503 = vadd.f32 %v1375, %v1446
        %v1504 = vadd.f32 %v1376, %v1451
        %v1505 = vadd.f32 %v1377, %v1451
        %v1506 = vadd.f32 %v1378, %v1456
        %v1507 = vadd.f32 %v1379, %v1456
        %v1508 = vadd.f32 %v1380, %v1461
        %v1509 = vadd.f32 %v1381, %v1461
        %v1510 = vadd.f32 %v1382, %v1466
        %v1511 = vadd.f32 %v1383, %v1466
        %v1512 = vadd.f32 %v1384, %v1471
        %v1513 = vadd.f32 %v1385, %v1471
        %v1514 = vadd.f32 %v1386, %v1476
        %v1515 = vadd.f32 %v1387, %v1476
        %v1516 = vadd.f32 %v1388, %v1481
        %v1517 = vadd.f32 %v1389, %v1481
        %v1518 = vadd.f32 %v1390, %v1486
        %v1519 = vadd.f32 %v1391, %v1486
        %1520 = vst [vmem:[%s244] sm:$0xff] %v1488
        %1521 = vst [vmem:[%s244 + $0x8] sm:$0xff] %v1489
        %1522 = vst [vmem:[%s244 + $0x10] sm:$0xff] %v1490
        %1523 = vst [vmem:[%s244 + $0x18] sm:$0xff] %v1491
        %1524 = vst [vmem:[%s244 + $0x20] sm:$0xff] %v1492
        %1525 = vst [vmem:[%s244 + $0x28] sm:$0xff] %v1493
        %1526 = vst [vmem:[%s244 + $0x30] sm:$0xff] %v1494
        %1527 = vst [vmem:[%s244 + $0x38] sm:$0xff] %v1495
        %1528 = vst [vmem:[%s244 + $0x40] sm:$0xff] %v1496
        %1529 = vst [vmem:[%s244 + $0x48] sm:$0xff] %v1497
        %1530 = vst [vmem:[%s244 + $0x50] sm:$0xff] %v1498
        %1531 = vst [vmem:[%s244 + $0x58] sm:$0xff] %v1499
        %1532 = vst [vmem:[%s244 + $0x60] sm:$0xff] %v1500
        %1533 = vst [vmem:[%s244 + $0x68] sm:$0xff] %v1501
        %1534 = vst [vmem:[%s244 + $0x70] sm:$0xff] %v1502
        %1535 = vst [vmem:[%s244 + $0x78] sm:$0xff] %v1503
        %1536 = vst [vmem:[%s244 + $0x80] sm:$0xff] %v1504
        %1537 = vst [vmem:[%s244 + $0x88] sm:$0xff] %v1505
        %1538 = vst [vmem:[%s244 + $0x90] sm:$0xff] %v1506
        %1539 = vst [vmem:[%s244 + $0x98] sm:$0xff] %v1507
        %1540 = vst [vmem:[%s244 + $0xa0] sm:$0xff] %v1508
        %1541 = vst [vmem:[%s244 + $0xa8] sm:$0xff] %v1509
        %1542 = vst [vmem:[%s244 + $0xb0] sm:$0xff] %v1510
        %1543 = vst [vmem:[%s244 + $0xb8] sm:$0xff] %v1511
        %1544 = vst [vmem:[%s244 + $0xc0] sm:$0xff] %v1512
        %1545 = vst [vmem:[%s244 + $0xc8] sm:$0xff] %v1513
        %1546 = vst [vmem:[%s244 + $0xd0] sm:$0xff] %v1514
        %1547 = vst [vmem:[%s244 + $0xd8] sm:$0xff] %v1515
        %1548 = vst [vmem:[%s244 + $0xe0] sm:$0xff] %v1516
        %1549 = vst [vmem:[%s244 + $0xe8] sm:$0xff] %v1517
        %1550 = vst [vmem:[%s244 + $0xf0] sm:$0xff] %v1518
        %1551 = vst [vmem:[%s244 + $0xf8] sm:$0xff] %v1519
        %s1552 = sand.u32 %s159, 1
        %s1553 = scalar_lea.sflag [#allocation3], %s1552
        %s1554 = sand.u32 %s159, 1
        %s1555 = smul.addr %s1554, 256
        %s1556 = scalar_lea.vmem [#allocation2], %s1555
        // Predicated region
        $region45: #{tpu_custom_call.1} parent=43 // pred_check
          %p1557 = pneg %p169
        $region46: #{tpu_custom_call.1} parent=43 // pred_check_branch
          %1559 = sbr.rel (%p1557) target = $region48
        $region47: #{tpu_custom_call.1} parent=43 // pred_region
          %s1561 = ssub.s32 4096, 4096
          %1562 = vsyncadd %s1553, %s1561
          %s1563 = smul.addr %s20, 32
          %s1564 = smul.addr %s1563, 128
          %s1565 = scalar_lea.hbm %s6, %s1564
          %s1566 = sshll.u32 %s1556, 4
          %s1567 = int_to_ptr.vmem [resolvable:$true] %s1566
          %1572 = dma.vmem_to_hbm [thread:$0]  %s1567, 4096, %s1565, %s1553, 256, 256, 16
        $region48: #{tpu_custom_call.1} parent=43 // pred_fallthru
          _
      $region44: #{tpu_custom_call.1} parent=5 // pred_fallthru
        _
      %p1573 = scmp.le.s32.totalorder 2, %s15
      // Predicated region
      $region49: #{tpu_custom_call.1} parent=5 // pred_check
        %p1574 = pneg %p1573
      $region50: #{tpu_custom_call.1} parent=5 // pred_check_branch
        %1576 = sbr.rel (%p1574) target = $region52
      $region51: #{tpu_custom_call.1} parent=5 // pred_region
        %s1577 = ssub.s32 %s15, 2
        // Predicated region
        $region53: #{tpu_custom_call.1} parent=51 // pred_check
          %p1578 = pneg %p175
        $region54: #{tpu_custom_call.1} parent=51 // pred_check_branch
          %1580 = sbr.rel (%p1578) target = $region56
        $region55: #{tpu_custom_call.1} parent=51 // pred_region
          %s1581 = sand.u32 %s160, 1
          %s1582 = scalar_lea.sflag [#allocation3], %s1581
          %s1583 = sand.u32 %s160, 1
          %s1584 = smul.addr %s1583, 256
          %s1585 = scalar_lea.vmem [#allocation2], %s1584
          %1586 = dma.done %s1582, 4096
        $region56: #{tpu_custom_call.1} parent=51 // pred_fallthru
          _
      $region52: #{tpu_custom_call.1} parent=5 // pred_fallthru
        _
    $region6: #{tpu_custom_call.1} parent=1 // loop_footer
      %s19 = sadd.s32 1, %s15
    $region7: #{tpu_custom_call.1} parent=1 // loop_footer_branch
      %14 = sbr.rel target = $region3
    $region8: #{tpu_custom_call.1} parent=1 // loop_exit
      _
    %1587 = vsyncpa [#allocation3], 1
    %s1588 = scalar_lea.sflag [#allocation3], 1
    %1589 = vsyncpa %s1588, 1

</llo_original>
